<compile_context>
chip_gen: v7x
topology: tpu7x:2x2x1
jax: 0.10.0
libtpu: 0.0.40
codegen_flags: <defaults>
</compile_context>

<pallas_src>
import functools
import math

import jax
import jax.numpy as jnp
from jax import lax
from jax.experimental import pallas as pl
from jax.experimental.pallas import tpu as pltpu

LANE = 128


# ----------------------------------------------------------------------------
# Fused kernel (one batch tile of TB examples per grid step)
#   idx_ref : (1,) int32 in SMEM (scalar prefetch)
#   x_ref   : (TB*S, E)  rows of cross_att_out for this batch tile
#   weights : wq/bq (scaled), wk/bk, wv/bv, wd/bd (lane-padded out),
#             w1 (concat-folded)/b1, w2/b2, w3 (lane-padded out)/b3
#   outputs : pred_ref (TB, PP), att_ref (TB, PE)   (lane-dense, padded)
# ----------------------------------------------------------------------------
def _fused_kernel(seq_len,
                  idx_ref,
                  x_ref,
                  wq_ref, bq_ref, wk_ref, bk_ref, wv_ref, bv_ref,
                  wd_ref, bd_ref,
                  w1_ref, b1_ref, w2_ref, b2_ref, w3_ref, b3_ref,
                  pred_ref, att_ref):
    rows, E = x_ref.shape            # rows == TB * S
    S = seq_len
    TB = rows // S
    idx = idx_ref[0]

    x2 = x_ref[...]                                               # (TB*S, E)

    # --- target-row gather as a tiny one-hot selection matmul (MXU) ---------
    col = lax.broadcasted_iota(jnp.int32, (TB, rows), 1)
    row = lax.broadcasted_iota(jnp.int32, (TB, rows), 0)
    one = jnp.ones((), dtype=x2.dtype)
    zero = jnp.zeros((), dtype=x2.dtype)
    sel = jnp.where(col == row * S + idx, one, zero)              # (TB, TB*S)
    t = jnp.dot(sel, x2, preferred_element_type=jnp.float32)      # (TB, E)

    # --- K/V projected for every row; Q only for the target rows ------------
    k2 = jnp.dot(x2, wk_ref[...], preferred_element_type=jnp.float32) + bk_ref[...]
    v2 = jnp.dot(x2, wv_ref[...], preferred_element_type=jnp.float32) + bv_ref[...]
    k3 = k2.reshape(TB, S, E)        # leading-dim split (free when S % 8 == 0)
    v3 = v2.reshape(TB, S, E)

    # 1/sqrt(E) attention scale is folded into wq/bq at prepare time.
    q = jnp.dot(t, wq_ref[...], preferred_element_type=jnp.float32) + bq_ref[...]
    q3 = q.reshape(TB, 1, E)

    # --- scores + softmax; both reductions as batched MXU dots --------------
    logits = jnp.einsum('bqe,bke->bqk', q3, k3,
                        preferred_element_type=jnp.float32)        # (TB, 1, S)
    m = jnp.max(logits, axis=-1, keepdims=True)
    p = jnp.exp(logits - m)
    denom = jnp.sum(p, axis=-1, keepdims=True)
    attn = p * pl.reciprocal(denom, approx=False)

    ctx = jnp.einsum('bqk,bke->bqe', attn, v3,
                     preferred_element_type=jnp.float32).reshape(TB, E)

    att = jnp.dot(ctx, wd_ref[...], preferred_element_type=jnp.float32) + bd_ref[...]
    att_ref[...] = att.astype(att_ref.dtype)                       # (TB, PE)

    # --- final_dense MLP on concat(t, t); concat folded into w1 -------------
    h1 = jnp.maximum(
        jnp.dot(t, w1_ref[...], preferred_element_type=jnp.float32) + b1_ref[...],
        0.0)
    h2 = jnp.maximum(
        jnp.dot(h1, w2_ref[...], preferred_element_type=jnp.float32) + b2_ref[...],
        0.0)
    pred = jnp.dot(h2, w3_ref[...], preferred_element_type=jnp.float32) + b3_ref[...]
    pred_ref[...] = pred.astype(pred_ref.dtype)                    # (TB, PP)


# ----------------------------------------------------------------------------
# One-time parameter fusion / padding (wrapper-side, done once)
# ----------------------------------------------------------------------------
def _pad_last(a, mult):
    tgt = -(-a.shape[-1] // mult) * mult
    if tgt == a.shape[-1]:
        return a
    pad = [(0, 0)] * (a.ndim - 1) + [(0, tgt - a.shape[-1])]
    return jnp.pad(a, pad)


def prepare_fused_params(attn_params, mlp_params, compute_dtype=jnp.float32):
    """Fold 1/sqrt(E) into Q, fold concat(t,t)@W1, lane-pad output heads.

    compute_dtype=jnp.bfloat16 is recommended on v6e/v7x (MXU-native, halves
    DMA bytes); default float32 keeps the correctness check tight.
    """
    wq, bq, wk, bk, wv, bv, wd, bd = attn_params
    w1, b1, w2, b2, w3, b3 = mlp_params
    E = wq.shape[0]
    scale = jnp.float32(1.0 / math.sqrt(E))

    wq_s, bq_s = wq * scale, bq * scale          # fold attention scale
    w1f = w1[:E, :] + w1[E:, :]                  # fold duplicate-concat

    # Lane-dense (multiple-of-128) output heads; padding is free at prepare
    # time and avoids masked vst.msk partial stores on the outputs.
    wd_p, bd_p = _pad_last(wd, LANE), _pad_last(bd, LANE)
    w3_p, b3_p = _pad_last(w3, LANE), _pad_last(b3, LANE)

    params = (wq_s, bq_s, wk, bk, wv, bv, wd_p, bd_p,
              w1f, b1, w2, b2, w3_p, b3_p)
    return tuple(p.astype(compute_dtype) for p in params)


# ----------------------------------------------------------------------------
# Full forward (mirrors trait_process_classification.forward)
# ----------------------------------------------------------------------------
def trait_process_classification_forward(index, cross_att_out, fused_params,
                                          batch_tile=None):
    B, S, E = cross_att_out.shape
    (wq_s, bq_s, wk, bk, wv, bv, wd_p, bd_p,
     w1f, b1, w2, b2, w3_p, b3_p) = fused_params
    PE = wd_p.shape[-1]
    PP = w3_p.shape[-1]

    # Batch tile: whole batch when small, 8 rows per step otherwise (keeps
    # all block second-minor dims 8-aligned or full).
    if batch_tile is None:
        batch_tile = 8 if (B > 8 and B % 8 == 0) else B
    assert B % batch_tile == 0
    TB = batch_tile
    grid = (B // TB,)

    # Reshape to 2-D in the wrapper (free metadata op) so the kernel's K/V
    # projections are single clean 2-D matmuls.
    x2d = cross_att_out.reshape(B * S, E).astype(wk.dtype)
    idx_arr = jnp.asarray([index], dtype=jnp.int32)

    full = lambda b, idx: (0, 0)

    grid_spec = pltpu.PrefetchScalarGridSpec(
        num_scalar_prefetch=1,
        grid=grid,
        in_specs=[
            pl.BlockSpec((TB * S, E), lambda b, idx: (b, 0)),   # x rows (tile b)
            pl.BlockSpec((E, E), full),        # wq (scaled)
            pl.BlockSpec((1, E), full),        # bq (scaled)
            pl.BlockSpec((E, E), full),        # wk
            pl.BlockSpec((1, E), full),        # bk
            pl.BlockSpec((E, E), full),        # wv
            pl.BlockSpec((1, E), full),        # bv
            pl.BlockSpec((E, PE), full),       # wd (lane-padded out dim)
            pl.BlockSpec((1, PE), full),       # bd
            pl.BlockSpec((E, E), full),        # w1 (concat-folded)
            pl.BlockSpec((1, E), full),        # b1
            pl.BlockSpec((E, 256), full),      # w2
            pl.BlockSpec((1, 256), full),      # b2
            pl.BlockSpec((256, PP), full),     # w3 (lane-padded out dim)
            pl.BlockSpec((1, PP), full),       # b3
        ],
        out_specs=(
            pl.BlockSpec((TB, PP), lambda b, idx: (b, 0)),      # padded pred
            pl.BlockSpec((TB, PE), lambda b, idx: (b, 0)),      # padded att_out
        ),
    )

    kernel = functools.partial(_fused_kernel, S)

    pred_pad, att_pad = pl.pallas_call(
        kernel,
        out_shape=(jax.ShapeDtypeStruct((B, PP), jnp.float32),
                   jax.ShapeDtypeStruct((B, PE), jnp.float32)),
        grid_spec=grid_spec,
        compiler_params=pltpu.CompilerParams(
            dimension_semantics=("parallel",)),
    )(idx_arr, x2d, wq_s, bq_s, wk, bk, wv, bv, wd_p, bd_p,
      w1f, b1, w2, b2, w3_p, b3_p)

    pred_score = pred_pad[:, :3]
    att_out = att_pad[:, :E][:, None, :]     # (B, 1, E), matches PyTorch att_out
    return pred_score, att_out


# ----------------------------------------------------------------------------
# Parameter initialization (deterministic; xavier-uniform-style, zero biases)
# ----------------------------------------------------------------------------
def _xavier_uniform(key, fan_in, fan_out):
    limit = math.sqrt(6.0 / (fan_in + fan_out))
    # stored as (in, out) so kernels compute x @ W
    return jax.random.uniform(key, (fan_in, fan_out), jnp.float32, -limit, limit)


def init_params(key, embed_dim):
    E = embed_dim
    keys = jax.random.split(key, 8)

    attn_params = []
    for i in range(4):                       # wq, wk, wv, dense
        attn_params.append(_xavier_uniform(keys[i], E, E))
        attn_params.append(jnp.zeros((1, E), jnp.float32))

    w1 = _xavier_uniform(keys[4], 2 * E, E)
    w2 = _xavier_uniform(keys[5], E, 256)
    w3 = _xavier_uniform(keys[6], 256, 3)
    b1 = jnp.zeros((1, E), jnp.float32)
    b2 = jnp.zeros((1, 256), jnp.float32)
    b3 = jnp.zeros((1, 3), jnp.float32)
    mlp_params = (w1, b1, w2, b2, w3, b3)

    return tuple(attn_params), mlp_params


# ----------------------------------------------------------------------------
# Pure-JAX reference (original unfused weights) for the correctness check
# ----------------------------------------------------------------------------
def _reference(index, cross_att_out, attn_params, mlp_params):
    wq, bq, wk, bk, wv, bv, wd, bd = attn_params
    w1, b1, w2, b2, w3, b3 = mlp_params
    target_rep = cross_att_out[:, index:index + 1]
    q = target_rep @ wq + bq
    k = cross_att_out @ wk + bk
    v = cross_att_out @ wv + bv
    logits = jnp.einsum("bqe,bke->bqk", q, k) / jnp.sqrt(jnp.float32(q.shape[-1]))
    attn = jax.nn.softmax(logits, axis=-1)
    att_out = jnp.einsum("bqk,bke->bqe", attn, v) @ wd + bd
    att_cat = jnp.concatenate([target_rep, target_rep], axis=-1)[:, 0, :]
    h1 = jnp.maximum(att_cat @ w1 + b1, 0.0)
    h2 = jnp.maximum(h1 @ w2 + b2, 0.0)
    return h2 @ w3 + b3, att_out


if __name__ == "__main__":
    B, S, E = 2, 8, 32          # batch, sequence length (num traits), embed_dim
    index = 3                   # target trait index (0 <= index < S)

    key = jax.random.PRNGKey(0)
    k_in, k_param = jax.random.split(key)
    cross_att_out = jax.random.normal(k_in, (B, S, E), jnp.float32)

    attn_params, mlp_params = init_params(k_param, E)
    fused_params = prepare_fused_params(attn_params, mlp_params)

    pred_score, att_out = trait_process_classification_forward(
        index, cross_att_out, fused_params)
    jax.block_until_ready(pred_score)
    jax.block_until_ready(att_out)

    ref_score, ref_att = _reference(index, cross_att_out, attn_params, mlp_params)
    assert pred_score.shape == (B, 3)
    assert att_out.shape == (B, 1, E)
    assert jnp.allclose(pred_score, ref_score, atol=1e-4, rtol=1e-4)
    assert jnp.allclose(att_out, ref_att, atol=1e-3, rtol=1e-3)

    print("KERNEL_OK")
</pallas_src>

<mosaic_0001>
module attributes {stable_mosaic.version = 11 : i64} {
  func.func @_fused_kernel(%arg0: i32, %arg1: memref<1xi32, #tpu.memory_space<smem>>, %arg2: memref<16x32xf32, #tpu.memory_space<vmem>>, %arg3: memref<32x32xf32, #tpu.memory_space<vmem>>, %arg4: memref<1x32xf32, #tpu.memory_space<vmem>>, %arg5: memref<32x32xf32, #tpu.memory_space<vmem>>, %arg6: memref<1x32xf32, #tpu.memory_space<vmem>>, %arg7: memref<32x32xf32, #tpu.memory_space<vmem>>, %arg8: memref<1x32xf32, #tpu.memory_space<vmem>>, %arg9: memref<32x128xf32, #tpu.memory_space<vmem>>, %arg10: memref<1x128xf32, #tpu.memory_space<vmem>>, %arg11: memref<32x32xf32, #tpu.memory_space<vmem>>, %arg12: memref<1x32xf32, #tpu.memory_space<vmem>>, %arg13: memref<32x256xf32, #tpu.memory_space<vmem>>, %arg14: memref<1x256xf32, #tpu.memory_space<vmem>>, %arg15: memref<256x128xf32, #tpu.memory_space<vmem>>, %arg16: memref<1x128xf32, #tpu.memory_space<vmem>>, %arg17: memref<2x128xf32, #tpu.memory_space<vmem>>, %arg18: memref<2x128xf32, #tpu.memory_space<vmem>>) attributes {dimension_semantics = [#tpu.dimension_semantics<parallel>], iteration_bounds = array<i64: 1>, scalar_prefetch = 1 : i64, scratch_operands = 0 : i64, tpu.core_type = #tpu.core_type<tc>, window_params = [{transform_indices = @transform_0, window_bounds = array<i64: 16, 32>}, {pipeline_mode = #tpu.pipeline_mode<synchronous>, transform_indices = @transform_1, window_bounds = array<i64: 32, 32>}, {pipeline_mode = #tpu.pipeline_mode<synchronous>, transform_indices = @transform_2, window_bounds = array<i64: 1, 32>}, {pipeline_mode = #tpu.pipeline_mode<synchronous>, transform_indices = @transform_3, window_bounds = array<i64: 32, 32>}, {pipeline_mode = #tpu.pipeline_mode<synchronous>, transform_indices = @transform_4, window_bounds = array<i64: 1, 32>}, {pipeline_mode = #tpu.pipeline_mode<synchronous>, transform_indices = @transform_5, window_bounds = array<i64: 32, 32>}, {pipeline_mode = #tpu.pipeline_mode<synchronous>, transform_indices = @transform_6, window_bounds = array<i64: 1, 32>}, {pipeline_mode = #tpu.pipeline_mode<synchronous>, transform_indices = @transform_7, window_bounds = array<i64: 32, 128>}, {pipeline_mode = #tpu.pipeline_mode<synchronous>, transform_indices = @transform_8, window_bounds = array<i64: 1, 128>}, {pipeline_mode = #tpu.pipeline_mode<synchronous>, transform_indices = @transform_9, window_bounds = array<i64: 32, 32>}, {pipeline_mode = #tpu.pipeline_mode<synchronous>, transform_indices = @transform_10, window_bounds = array<i64: 1, 32>}, {pipeline_mode = #tpu.pipeline_mode<synchronous>, transform_indices = @transform_11, window_bounds = array<i64: 32, 256>}, {pipeline_mode = #tpu.pipeline_mode<synchronous>, transform_indices = @transform_12, window_bounds = array<i64: 1, 256>}, {pipeline_mode = #tpu.pipeline_mode<synchronous>, transform_indices = @transform_13, window_bounds = array<i64: 256, 128>}, {pipeline_mode = #tpu.pipeline_mode<synchronous>, transform_indices = @transform_14, window_bounds = array<i64: 1, 128>}, {transform_indices = @transform_15, window_bounds = array<i64: 2, 128>}, {transform_indices = @transform_16, window_bounds = array<i64: 2, 128>}]} {
    %c0 = arith.constant 0 : index
    %0 = memref.load %arg1[%c0] : memref<1xi32, #tpu.memory_space<smem>>
    %c0_0 = arith.constant 0 : index
    %c0_1 = arith.constant 0 : index
    %1 = vector.load %arg2[%c0_0, %c0_1] : memref<16x32xf32, #tpu.memory_space<vmem>>, vector<16x32xf32>
    %2 = tpu.iota {dimensions = array<i32: 1>} : vector<2x16xi32>
    %3 = tpu.iota {dimensions = array<i32: 0>} : vector<2x16xi32>
    %c8_i32 = arith.constant 8 : i32
    %4 = vector.broadcast %c8_i32 : i32 to vector<2x16xi32>
    %5 = arith.muli %3, %4 : vector<2x16xi32>
    %6 = vector.broadcast %0 : i32 to vector<2x16xi32>
    %7 = arith.addi %5, %6 : vector<2x16xi32>
    %8 = arith.cmpi eq, %2, %7 : vector<2x16xi32>
    %cst = arith.constant 1.000000e+00 : f32
    %cst_2 = arith.constant 0.000000e+00 : f32
    %9 = vector.broadcast %cst : f32 to vector<2x16xf32>
    %10 = vector.broadcast %cst_2 : f32 to vector<2x16xf32>
    %11 = arith.select %8, %9, %10 : vector<2x16xi1>, vector<2x16xf32>
    %cst_3 = arith.constant dense<0.000000e+00> : vector<2x32xf32>
    %12 = tpu.matmul %11, %1, %cst_3 {dimension_numbers = #tpu.dot_dimension_numbers<[1], [0], [0], [1], [0, 0, 1, 1], [], []>} : vector<2x16xf32>, vector<16x32xf32>, vector<2x32xf32> -> vector<2x32xf32>
    %c0_4 = arith.constant 0 : index
    %c0_5 = arith.constant 0 : index
    %13 = vector.load %arg5[%c0_4, %c0_5] : memref<32x32xf32, #tpu.memory_space<vmem>>, vector<32x32xf32>
    %cst_6 = arith.constant dense<0.000000e+00> : vector<16x32xf32>
    %14 = tpu.matmul %1, %13, %cst_6 {dimension_numbers = #tpu.dot_dimension_numbers<[1], [0], [0], [1], [0, 0, 1, 1], [], []>} : vector<16x32xf32>, vector<32x32xf32>, vector<16x32xf32> -> vector<16x32xf32>
    %c0_7 = arith.constant 0 : index
    %c0_8 = arith.constant 0 : index
    %15 = vector.load %arg6[%c0_7, %c0_8] : memref<1x32xf32, #tpu.memory_space<vmem>>, vector<1x32xf32>
    %16 = vector.broadcast %15 : vector<1x32xf32> to vector<16x32xf32>
    %17 = arith.addf %14, %16 : vector<16x32xf32>
    %c0_9 = arith.constant 0 : index
    %c0_10 = arith.constant 0 : index
    %18 = vector.load %arg7[%c0_9, %c0_10] : memref<32x32xf32, #tpu.memory_space<vmem>>, vector<32x32xf32>
    %cst_11 = arith.constant dense<0.000000e+00> : vector<16x32xf32>
    %19 = tpu.matmul %1, %18, %cst_11 {dimension_numbers = #tpu.dot_dimension_numbers<[1], [0], [0], [1], [0, 0, 1, 1], [], []>} : vector<16x32xf32>, vector<32x32xf32>, vector<16x32xf32> -> vector<16x32xf32>
    %c0_12 = arith.constant 0 : index
    %c0_13 = arith.constant 0 : index
    %20 = vector.load %arg8[%c0_12, %c0_13] : memref<1x32xf32, #tpu.memory_space<vmem>>, vector<1x32xf32>
    %21 = vector.broadcast %20 : vector<1x32xf32> to vector<16x32xf32>
    %22 = arith.addf %19, %21 : vector<16x32xf32>
    %23 = vector.shape_cast %17 : vector<16x32xf32> to vector<2x8x32xf32>
    %24 = vector.shape_cast %22 : vector<16x32xf32> to vector<2x8x32xf32>
    %c0_14 = arith.constant 0 : index
    %c0_15 = arith.constant 0 : index
    %25 = vector.load %arg3[%c0_14, %c0_15] : memref<32x32xf32, #tpu.memory_space<vmem>>, vector<32x32xf32>
    %cst_16 = arith.constant dense<0.000000e+00> : vector<2x32xf32>
    %26 = tpu.matmul %12, %25, %cst_16 {dimension_numbers = #tpu.dot_dimension_numbers<[1], [0], [0], [1], [0, 0, 1, 1], [], []>} : vector<2x32xf32>, vector<32x32xf32>, vector<2x32xf32> -> vector<2x32xf32>
    %c0_17 = arith.constant 0 : index
    %c0_18 = arith.constant 0 : index
    %27 = vector.load %arg4[%c0_17, %c0_18] : memref<1x32xf32, #tpu.memory_space<vmem>>, vector<1x32xf32>
    %28 = vector.broadcast %27 : vector<1x32xf32> to vector<2x32xf32>
    %29 = arith.addf %26, %28 : vector<2x32xf32>
    %30 = vector.shape_cast %29 : vector<2x32xf32> to vector<2x1x32xf32>
    "tpu.trace_start"() <{level = 10 : i32, message = "bqe,bke->bqk"}> : () -> ()
    %cst_19 = arith.constant dense<0.000000e+00> : vector<2x1x8xf32>
    %31 = tpu.matmul %30, %23, %cst_19 {dimension_numbers = #tpu.dot_dimension_numbers<[2], [2], [1], [1], [0, 0, 0, 1, 1, 1], [0], [0]>} : vector<2x1x32xf32>, vector<2x8x32xf32>, vector<2x1x8xf32> -> vector<2x1x8xf32>
    "tpu.trace_stop"() : () -> ()
    %cst_20 = arith.constant dense<0xFF800000> : vector<2x1xf32>
    %32 = vector.multi_reduction <maximumf>, %31, %cst_20 [2] : vector<2x1x8xf32> to vector<2x1xf32>
    %33 = vector.shape_cast %32 : vector<2x1xf32> to vector<2x1x1xf32>
    %34 = vector.broadcast %33 : vector<2x1x1xf32> to vector<2x1x8xf32>
    %35 = arith.subf %31, %34 : vector<2x1x8xf32>
    %36 = math.exp %35 : vector<2x1x8xf32>
    %cst_21 = arith.constant dense<0.000000e+00> : vector<2x1xf32>
    %37 = vector.multi_reduction <add>, %36, %cst_21 [2] : vector<2x1x8xf32> to vector<2x1xf32>
    %38 = vector.shape_cast %37 : vector<2x1xf32> to vector<2x1x1xf32>
    %39 = tpu.reciprocal %38 : vector<2x1x1xf32> -> vector<2x1x1xf32>
    %40 = vector.broadcast %39 : vector<2x1x1xf32> to vector<2x1x8xf32>
    %41 = arith.mulf %36, %40 : vector<2x1x8xf32>
    "tpu.trace_start"() <{level = 10 : i32, message = "bqk,bke->bqe"}> : () -> ()
    %cst_22 = arith.constant dense<0.000000e+00> : vector<2x1x32xf32>
    %42 = tpu.matmul %41, %24, %cst_22 {dimension_numbers = #tpu.dot_dimension_numbers<[2], [1], [1], [2], [0, 0, 0, 1, 1, 2], [0], [0]>} : vector<2x1x8xf32>, vector<2x8x32xf32>, vector<2x1x32xf32> -> vector<2x1x32xf32>
    "tpu.trace_stop"() : () -> ()
    %43 = vector.shape_cast %42 : vector<2x1x32xf32> to vector<2x32xf32>
    %c0_23 = arith.constant 0 : index
    %c0_24 = arith.constant 0 : index
    %44 = vector.load %arg9[%c0_23, %c0_24] : memref<32x128xf32, #tpu.memory_space<vmem>>, vector<32x128xf32>
    %cst_25 = arith.constant dense<0.000000e+00> : vector<2x128xf32>
    %45 = tpu.matmul %43, %44, %cst_25 {dimension_numbers = #tpu.dot_dimension_numbers<[1], [0], [0], [1], [0, 0, 1, 1], [], []>} : vector<2x32xf32>, vector<32x128xf32>, vector<2x128xf32> -> vector<2x128xf32>
    %c0_26 = arith.constant 0 : index
    %c0_27 = arith.constant 0 : index
    %46 = vector.load %arg10[%c0_26, %c0_27] : memref<1x128xf32, #tpu.memory_space<vmem>>, vector<1x128xf32>
    %47 = vector.broadcast %46 : vector<1x128xf32> to vector<2x128xf32>
    %48 = arith.addf %45, %47 : vector<2x128xf32>
    %c0_28 = arith.constant 0 : index
    %c0_29 = arith.constant 0 : index
    %49 = vector.load %arg18[%c0_28, %c0_29] : memref<2x128xf32, #tpu.memory_space<vmem>>, vector<2x128xf32>
    tpu.vector_store %arg18[%c0_28, %c0_29], %48 {strides = array<i32>} : memref<2x128xf32, #tpu.memory_space<vmem>>, vector<2x128xf32>,
    %c0_30 = arith.constant 0 : index
    %c0_31 = arith.constant 0 : index
    %50 = vector.load %arg11[%c0_30, %c0_31] : memref<32x32xf32, #tpu.memory_space<vmem>>, vector<32x32xf32>
    %cst_32 = arith.constant dense<0.000000e+00> : vector<2x32xf32>
    %51 = tpu.matmul %12, %50, %cst_32 {dimension_numbers = #tpu.dot_dimension_numbers<[1], [0], [0], [1], [0, 0, 1, 1], [], []>} : vector<2x32xf32>, vector<32x32xf32>, vector<2x32xf32> -> vector<2x32xf32>
    %c0_33 = arith.constant 0 : index
    %c0_34 = arith.constant 0 : index
    %52 = vector.load %arg12[%c0_33, %c0_34] : memref<1x32xf32, #tpu.memory_space<vmem>>, vector<1x32xf32>
    %53 = vector.broadcast %52 : vector<1x32xf32> to vector<2x32xf32>
    %54 = arith.addf %51, %53 : vector<2x32xf32>
    %cst_35 = arith.constant 0.000000e+00 : f32
    %55 = vector.broadcast %cst_35 : f32 to vector<2x32xf32>
    %56 = arith.maximumf %54, %55 : vector<2x32xf32>
    %c0_36 = arith.constant 0 : index
    %c0_37 = arith.constant 0 : index
    %57 = vector.load %arg13[%c0_36, %c0_37] : memref<32x256xf32, #tpu.memory_space<vmem>>, vector<32x256xf32>
    %cst_38 = arith.constant dense<0.000000e+00> : vector<2x256xf32>
    %58 = tpu.matmul %56, %57, %cst_38 {dimension_numbers = #tpu.dot_dimension_numbers<[1], [0], [0], [1], [0, 0, 1, 1], [], []>} : vector<2x32xf32>, vector<32x256xf32>, vector<2x256xf32> -> vector<2x256xf32>
    %c0_39 = arith.constant 0 : index
    %c0_40 = arith.constant 0 : index
    %59 = vector.load %arg14[%c0_39, %c0_40] : memref<1x256xf32, #tpu.memory_space<vmem>>, vector<1x256xf32>
    %60 = vector.broadcast %59 : vector<1x256xf32> to vector<2x256xf32>
    %61 = arith.addf %58, %60 : vector<2x256xf32>
    %cst_41 = arith.constant 0.000000e+00 : f32
    %62 = vector.broadcast %cst_41 : f32 to vector<2x256xf32>
    %63 = arith.maximumf %61, %62 : vector<2x256xf32>
    %c0_42 = arith.constant 0 : index
    %c0_43 = arith.constant 0 : index
    %64 = vector.load %arg15[%c0_42, %c0_43] : memref<256x128xf32, #tpu.memory_space<vmem>>, vector<256x128xf32>
    %cst_44 = arith.constant dense<0.000000e+00> : vector<2x128xf32>
    %65 = tpu.matmul %63, %64, %cst_44 {dimension_numbers = #tpu.dot_dimension_numbers<[1], [0], [0], [1], [0, 0, 1, 1], [], []>} : vector<2x256xf32>, vector<256x128xf32>, vector<2x128xf32> -> vector<2x128xf32>
    %c0_45 = arith.constant 0 : index
    %c0_46 = arith.constant 0 : index
    %66 = vector.load %arg16[%c0_45, %c0_46] : memref<1x128xf32, #tpu.memory_space<vmem>>, vector<1x128xf32>
    %67 = vector.broadcast %66 : vector<1x128xf32> to vector<2x128xf32>
    %68 = arith.addf %65, %67 : vector<2x128xf32>
    %c0_47 = arith.constant 0 : index
    %c0_48 = arith.constant 0 : index
    %69 = vector.load %arg17[%c0_47, %c0_48] : memref<2x128xf32, #tpu.memory_space<vmem>>, vector<2x128xf32>
    tpu.vector_store %arg17[%c0_47, %c0_48], %68 {strides = array<i32>} : memref<2x128xf32, #tpu.memory_space<vmem>>, vector<2x128xf32>,
    return
  }
  func.func @transform_0(%arg0: i32, %arg1: memref<1xi32, #tpu.memory_space<smem>>) -> (i32, i32) {
    %c0_i32 = arith.constant 0 : i32
    %c0_i32_0 = arith.constant 0 : i32
    return %arg0, %c0_i32 : i32, i32
  }
  func.func @transform_1(%arg0: i32, %arg1: memref<1xi32, #tpu.memory_space<smem>>) -> (i32, i32) {
    %c0_i32 = arith.constant 0 : i32
    %c0_i32_0 = arith.constant 0 : i32
    %c0_i32_1 = arith.constant 0 : i32
    return %c0_i32, %c0_i32_0 : i32, i32
  }
  func.func @transform_2(%arg0: i32, %arg1: memref<1xi32, #tpu.memory_space<smem>>) -> (i32, i32) {
    %c0_i32 = arith.constant 0 : i32
    %c0_i32_0 = arith.constant 0 : i32
    %c0_i32_1 = arith.constant 0 : i32
    return %c0_i32, %c0_i32_0 : i32, i32
  }
  func.func @transform_3(%arg0: i32, %arg1: memref<1xi32, #tpu.memory_space<smem>>) -> (i32, i32) {
    %c0_i32 = arith.constant 0 : i32
    %c0_i32_0 = arith.constant 0 : i32
    %c0_i32_1 = arith.constant 0 : i32
    return %c0_i32, %c0_i32_0 : i32, i32
  }
  func.func @transform_4(%arg0: i32, %arg1: memref<1xi32, #tpu.memory_space<smem>>) -> (i32, i32) {
    %c0_i32 = arith.constant 0 : i32
    %c0_i32_0 = arith.constant 0 : i32
    %c0_i32_1 = arith.constant 0 : i32
    return %c0_i32, %c0_i32_0 : i32, i32
  }
  func.func @transform_5(%arg0: i32, %arg1: memref<1xi32, #tpu.memory_space<smem>>) -> (i32, i32) {
    %c0_i32 = arith.constant 0 : i32
    %c0_i32_0 = arith.constant 0 : i32
    %c0_i32_1 = arith.constant 0 : i32
    return %c0_i32, %c0_i32_0 : i32, i32
  }
  func.func @transform_6(%arg0: i32, %arg1: memref<1xi32, #tpu.memory_space<smem>>) -> (i32, i32) {
    %c0_i32 = arith.constant 0 : i32
    %c0_i32_0 = arith.constant 0 : i32
    %c0_i32_1 = arith.constant 0 : i32
    return %c0_i32, %c0_i32_0 : i32, i32
  }
  func.func @transform_7(%arg0: i32, %arg1: memref<1xi32, #tpu.memory_space<smem>>) -> (i32, i32) {
    %c0_i32 = arith.constant 0 : i32
    %c0_i32_0 = arith.constant 0 : i32
    %c0_i32_1 = arith.constant 0 : i32
    return %c0_i32, %c0_i32_0 : i32, i32
  }
  func.func @transform_8(%arg0: i32, %arg1: memref<1xi32, #tpu.memory_space<smem>>) -> (i32, i32) {
    %c0_i32 = arith.constant 0 : i32
    %c0_i32_0 = arith.constant 0 : i32
    %c0_i32_1 = arith.constant 0 : i32
    return %c0_i32, %c0_i32_0 : i32, i32
  }
  func.func @transform_9(%arg0: i32, %arg1: memref<1xi32, #tpu.memory_space<smem>>) -> (i32, i32) {
    %c0_i32 = arith.constant 0 : i32
    %c0_i32_0 = arith.constant 0 : i32
    %c0_i32_1 = arith.constant 0 : i32
    return %c0_i32, %c0_i32_0 : i32, i32
  }
  func.func @transform_10(%arg0: i32, %arg1: memref<1xi32, #tpu.memory_space<smem>>) -> (i32, i32) {
    %c0_i32 = arith.constant 0 : i32
    %c0_i32_0 = arith.constant 0 : i32
    %c0_i32_1 = arith.constant 0 : i32
    return %c0_i32, %c0_i32_0 : i32, i32
  }
  func.func @transform_11(%arg0: i32, %arg1: memref<1xi32, #tpu.memory_space<smem>>) -> (i32, i32) {
    %c0_i32 = arith.constant 0 : i32
    %c0_i32_0 = arith.constant 0 : i32
    %c0_i32_1 = arith.constant 0 : i32
    return %c0_i32, %c0_i32_0 : i32, i32
  }
  func.func @transform_12(%arg0: i32, %arg1: memref<1xi32, #tpu.memory_space<smem>>) -> (i32, i32) {
    %c0_i32 = arith.constant 0 : i32
    %c0_i32_0 = arith.constant 0 : i32
    %c0_i32_1 = arith.constant 0 : i32
    return %c0_i32, %c0_i32_0 : i32, i32
  }
  func.func @transform_13(%arg0: i32, %arg1: memref<1xi32, #tpu.memory_space<smem>>) -> (i32, i32) {
    %c0_i32 = arith.constant 0 : i32
    %c0_i32_0 = arith.constant 0 : i32
    %c0_i32_1 = arith.constant 0 : i32
    return %c0_i32, %c0_i32_0 : i32, i32
  }
  func.func @transform_14(%arg0: i32, %arg1: memref<1xi32, #tpu.memory_space<smem>>) -> (i32, i32) {
    %c0_i32 = arith.constant 0 : i32
    %c0_i32_0 = arith.constant 0 : i32
    %c0_i32_1 = arith.constant 0 : i32
    return %c0_i32, %c0_i32_0 : i32, i32
  }
  func.func @transform_15(%arg0: i32, %arg1: memref<1xi32, #tpu.memory_space<smem>>) -> (i32, i32) {
    %c0_i32 = arith.constant 0 : i32
    %c0_i32_0 = arith.constant 0 : i32
    return %arg0, %c0_i32 : i32, i32
  }
  func.func @transform_16(%arg0: i32, %arg1: memref<1xi32, #tpu.memory_space<smem>>) -> (i32, i32) {
    %c0_i32 = arith.constant 0 : i32
    %c0_i32_0 = arith.constant 0 : i32
    return %arg0, %c0_i32 : i32, i32
  }
}

</mosaic_0001>

<llo_original>
// kernel: tpu_custom_call.1
$region0: #{tpu_custom_call.1}
  #allocation0 [shape = 'u32[]', space=smem, size = 0x4, offset = 0x4, fixed_abs, tag = 'smem constant byte address 0x4 - core index']
  #allocation1 [shape = 'u32[144,128]{1,0:T(1,128)}', space=vmem, size = 0x12000, scoped, tag = 'internal scratch']
  #allocation2 [shape = 's32[1]{0}', space=sflag, size = 0x4, scoped, tag = 'scoped memory for tpu_custom_call.1']
  #allocation3 [shape = 's32[1]{0:T(128)S(6)}', space=smem, size = 0x200, scoped, tag = 'prefetched SMEM operand 0']
  %s0 = inlined_call_operand.<no memory space> [shape: s32[1], index: 0, kind: input, shape index: {}]
  %s1 = inlined_call_operand.hbm [shape: f32[16,32], index: 1, kind: input, shape index: {}]
  %s2 = inlined_call_operand.hbm [shape: f32[32,32], index: 2, kind: input, shape index: {}]
  %s3 = inlined_call_operand.vmem [shape: f32[1,32], index: 3, kind: input, shape index: {}]
  %s4 = inlined_call_operand.hbm [shape: f32[32,32], index: 4, kind: input, shape index: {}]
  %s5 = inlined_call_operand.vmem [shape: f32[1,32], index: 5, kind: input, shape index: {}]
  %s6 = inlined_call_operand.hbm [shape: f32[32,32], index: 6, kind: input, shape index: {}]
  %s7 = inlined_call_operand.vmem [shape: f32[1,32], index: 7, kind: input, shape index: {}]
  %s8 = inlined_call_operand.hbm [shape: f32[32,128], index: 8, kind: input, shape index: {}]
  %s9 = inlined_call_operand.hbm [shape: f32[1,128], index: 9, kind: input, shape index: {}]
  %s10 = inlined_call_operand.vmem [shape: f32[32,32], index: 10, kind: input, shape index: {}]
  %s11 = inlined_call_operand.vmem [shape: f32[1,32], index: 11, kind: input, shape index: {}]
  %s12 = inlined_call_operand.hbm [shape: f32[32,256], index: 12, kind: input, shape index: {}]
  %s13 = inlined_call_operand.vmem [shape: f32[1,256], index: 13, kind: input, shape index: {}]
  %s14 = inlined_call_operand.hbm [shape: f32[256,128], index: 14, kind: input, shape index: {}]
  %s15 = inlined_call_operand.vmem [shape: f32[1,128], index: 15, kind: input, shape index: {}]
  %s16 = inlined_call_operand.hbm [shape: f32[2,128], index: 16, kind: output, shape index: {0}]
  %s17 = inlined_call_operand.hbm [shape: f32[2,128], index: 17, kind: output, shape index: {1}]
  %18 = xla_tuple %s16, %s17
  %s19 = sld [smem:[#allocation0]]
  $region110: #{tpu_custom_call.1} parent=0
    _
  %s21 = ssub.s32 1, %s19
  %s22 = scalar_select 0, %s21, %s19
  %23 = sst [smem:[#allocation3]] %s0
  $region1: #{tpu_custom_call.1} parent=0
    #allocation4 [shape = 'u8[8192]{0}', space=vmem, size = 0x2000, scoped, tag = 'input window, operand 1, single buffered']
    #allocation5 [shape = 's32[1]{0}', space=sflag, size = 0x4, scoped, tag = 'scoped memory for tpu_custom_call.1']
    #allocation6 [shape = 's32[1]{0}', space=sflag, size = 0x4, scoped, tag = 'scoped memory for tpu_custom_call.1']
    #allocation7 [shape = 'u8[16384]{0}', space=vmem, size = 0x4000, scoped, tag = 'input window, operand 2, single buffered']
    #allocation8 [shape = 's32[1]{0}', space=sflag, size = 0x4, scoped, tag = 'scoped memory for tpu_custom_call.1']
    #allocation9 [shape = 'u8[16384]{0}', space=vmem, size = 0x4000, scoped, tag = 'input window, operand 4, single buffered']
    #allocation10 [shape = 'u8[16384]{0}', space=vmem, size = 0x4000, scoped, tag = 'input window, operand 6, single buffered']
    #allocation11 [shape = 's32[1]{0}', space=sflag, size = 0x4, scoped, tag = 'scoped memory for tpu_custom_call.1']
    #allocation12 [shape = 'u8[16384]{0}', space=vmem, size = 0x4000, scoped, tag = 'input window, operand 8, single buffered']
    #allocation13 [shape = 'u8[512]{0}', space=vmem, size = 0x400, scoped, tag = 'input window, operand 9, single buffered']
    #allocation14 [shape = 's32[1]{0}', space=sflag, size = 0x4, scoped, tag = 'scoped memory for tpu_custom_call.1']
    #allocation15 [shape = 'u8[32768]{0}', space=vmem, size = 0x8000, scoped, tag = 'input window, operand 12, single buffered']
    #allocation16 [shape = 'u8[131072]{0}', space=vmem, size = 0x20000, scoped, tag = 'input window, operand 14, single buffered']
    #allocation17 [shape = 's32[1]{0}', space=sflag, size = 0x4, scoped, tag = 'scoped memory for tpu_custom_call.1']
    #allocation18 [shape = 'u8[1024]{0}', space=vmem, size = 0x400, scoped, tag = 'output window, operand 0, single buffered']
    #allocation19 [shape = 'u8[1024]{0}', space=vmem, size = 0x400, scoped, tag = 'output window, operand 1, single buffered']
    #allocation20 [shape = 's32[1]{0}', space=sflag, size = 0x4, scoped, tag = 'scoped memory for tpu_custom_call.1']
    %24 = vsyncpa [#allocation5], 0
    %25 = vsyncpa [#allocation8], 0
    %26 = vsyncpa [#allocation11], 0
    %27 = vsyncpa [#allocation14], 0
    %28 = vsyncpa [#allocation17], 0
    %29 = vsyncpa [#allocation6], 0
    %30 = vsyncpa [#allocation20], 0
    // Predicated region
    $region2: #{tpu_custom_call.1} parent=1 // pred_check
      _
    $region3: #{tpu_custom_call.1} parent=1 // pred_check_branch
      %32 = sbr.rel (0) target = $region5
    $region4: #{tpu_custom_call.1} parent=1 // pred_region
      %s34 = ssub.s32 256, 256
      %35 = vsyncadd [#allocation5], %s34
      %s36 = sshll.u32 [#allocation4], 4
      %s37 = int_to_ptr.vmem [resolvable:$true] %s36
      %42 = dma.hbm_to_vmem [thread:$0]  %s1, 256, %s37, [#allocation5], 128, 128, 8
    $region5: #{tpu_custom_call.1} parent=1 // pred_fallthru
      _
    // Predicated region
    $region6: #{tpu_custom_call.1} parent=1 // pred_check
      _
    $region7: #{tpu_custom_call.1} parent=1 // pred_check_branch
      %44 = sbr.rel (0) target = $region9
    $region8: #{tpu_custom_call.1} parent=1 // pred_region
      %s46 = ssub.s32 512, 512
      %47 = vsyncadd [#allocation8], %s46
      %s48 = sshll.u32 [#allocation7], 4
      %s49 = int_to_ptr.vmem [resolvable:$true] %s48
      %54 = dma.hbm_to_vmem [thread:$0]  %s2, 512, %s49, [#allocation8], 128, 128, 8
    $region9: #{tpu_custom_call.1} parent=1 // pred_fallthru
      _
    // Predicated region
    $region10: #{tpu_custom_call.1} parent=1 // pred_check
      _
    $region11: #{tpu_custom_call.1} parent=1 // pred_check_branch
      %56 = sbr.rel (0) target = $region13
    $region12: #{tpu_custom_call.1} parent=1 // pred_region
      _
    $region13: #{tpu_custom_call.1} parent=1 // pred_fallthru
      _
    // Predicated region
    $region14: #{tpu_custom_call.1} parent=1 // pred_check
      _
    $region15: #{tpu_custom_call.1} parent=1 // pred_check_branch
      %58 = sbr.rel (0) target = $region17
    $region16: #{tpu_custom_call.1} parent=1 // pred_region
      %s60 = ssub.s32 512, 512
      %61 = vsyncadd [#allocation8], %s60
      %s62 = sshll.u32 [#allocation9], 4
      %s63 = int_to_ptr.vmem [resolvable:$true] %s62
      %68 = dma.hbm_to_vmem [thread:$0]  %s4, 512, %s63, [#allocation8], 128, 128, 8
    $region17: #{tpu_custom_call.1} parent=1 // pred_fallthru
      _
    // Predicated region
    $region18: #{tpu_custom_call.1} parent=1 // pred_check
      _
    $region19: #{tpu_custom_call.1} parent=1 // pred_check_branch
      %70 = sbr.rel (0) target = $region21
    $region20: #{tpu_custom_call.1} parent=1 // pred_region
      _
    $region21: #{tpu_custom_call.1} parent=1 // pred_fallthru
      _
    // Predicated region
    $region22: #{tpu_custom_call.1} parent=1 // pred_check
      _
    $region23: #{tpu_custom_call.1} parent=1 // pred_check_branch
      %72 = sbr.rel (0) target = $region25
    $region24: #{tpu_custom_call.1} parent=1 // pred_region
      %s74 = ssub.s32 512, 512
      %75 = vsyncadd [#allocation11], %s74
      %s76 = sshll.u32 [#allocation10], 4
      %s77 = int_to_ptr.vmem [resolvable:$true] %s76
      %82 = dma.hbm_to_vmem [thread:$0]  %s6, 512, %s77, [#allocation11], 128, 128, 8
    $region25: #{tpu_custom_call.1} parent=1 // pred_fallthru
      _
    // Predicated region
    $region26: #{tpu_custom_call.1} parent=1 // pred_check
      _
    $region27: #{tpu_custom_call.1} parent=1 // pred_check_branch
      %84 = sbr.rel (0) target = $region29
    $region28: #{tpu_custom_call.1} parent=1 // pred_region
      _
    $region29: #{tpu_custom_call.1} parent=1 // pred_fallthru
      _
    // Predicated region
    $region30: #{tpu_custom_call.1} parent=1 // pred_check
      _
    $region31: #{tpu_custom_call.1} parent=1 // pred_check_branch
      %86 = sbr.rel (0) target = $region33
    $region32: #{tpu_custom_call.1} parent=1 // pred_region
      %s88 = ssub.s32 512, 512
      %89 = vsyncadd [#allocation11], %s88
      %s90 = sshll.u32 [#allocation12], 4
      %s91 = int_to_ptr.vmem [resolvable:$true] %s90
      %96 = dma.hbm_to_vmem [thread:$0]  %s8, 512, %s91, [#allocation11], 128, 128, 8
    $region33: #{tpu_custom_call.1} parent=1 // pred_fallthru
      _
    // Predicated region
    $region34: #{tpu_custom_call.1} parent=1 // pred_check
      _
    $region35: #{tpu_custom_call.1} parent=1 // pred_check_branch
      %98 = sbr.rel (0) target = $region37
    $region36: #{tpu_custom_call.1} parent=1 // pred_region
      %s100 = ssub.s32 16, 16
      %101 = vsyncadd [#allocation14], %s100
      %s103 = sshll.u32 [#allocation13], 4
      %s104 = int_to_ptr.vmem [resolvable:$true] %s103
      %106 = dma.hbm_to_vmem [thread:$0]  %s9, 16, %s104, [#allocation14]
    $region37: #{tpu_custom_call.1} parent=1 // pred_fallthru
      _
    // Predicated region
    $region38: #{tpu_custom_call.1} parent=1 // pred_check
      _
    $region39: #{tpu_custom_call.1} parent=1 // pred_check_branch
      %108 = sbr.rel (0) target = $region41
    $region40: #{tpu_custom_call.1} parent=1 // pred_region
      _
    $region41: #{tpu_custom_call.1} parent=1 // pred_fallthru
      _
    // Predicated region
    $region42: #{tpu_custom_call.1} parent=1 // pred_check
      _
    $region43: #{tpu_custom_call.1} parent=1 // pred_check_branch
      %110 = sbr.rel (0) target = $region45
    $region44: #{tpu_custom_call.1} parent=1 // pred_region
      _
    $region45: #{tpu_custom_call.1} parent=1 // pred_fallthru
      _
    // Predicated region
    $region46: #{tpu_custom_call.1} parent=1 // pred_check
      _
    $region47: #{tpu_custom_call.1} parent=1 // pred_check_branch
      %112 = sbr.rel (0) target = $region49
    $region48: #{tpu_custom_call.1} parent=1 // pred_region
      %s114 = ssub.s32 1024, 1024
      %115 = vsyncadd [#allocation14], %s114
      %s116 = sshll.u32 [#allocation15], 4
      %s117 = int_to_ptr.vmem [resolvable:$true] %s116
      %122 = dma.hbm_to_vmem [thread:$0]  %s12, 1024, %s117, [#allocation14], 256, 256, 16
    $region49: #{tpu_custom_call.1} parent=1 // pred_fallthru
      _
    // Predicated region
    $region50: #{tpu_custom_call.1} parent=1 // pred_check
      _
    $region51: #{tpu_custom_call.1} parent=1 // pred_check_branch
      %124 = sbr.rel (0) target = $region53
    $region52: #{tpu_custom_call.1} parent=1 // pred_region
      _
    $region53: #{tpu_custom_call.1} parent=1 // pred_fallthru
      _
    // Predicated region
    $region54: #{tpu_custom_call.1} parent=1 // pred_check
      _
    $region55: #{tpu_custom_call.1} parent=1 // pred_check_branch
      %126 = sbr.rel (0) target = $region57
    $region56: #{tpu_custom_call.1} parent=1 // pred_region
      %s128 = ssub.s32 4096, 4096
      %129 = vsyncadd [#allocation17], %s128
      %s130 = sshll.u32 [#allocation16], 4
      %s131 = int_to_ptr.vmem [resolvable:$true] %s130
      %136 = dma.hbm_to_vmem [thread:$0]  %s14, 4096, %s131, [#allocation17], 128, 128, 8
    $region57: #{tpu_custom_call.1} parent=1 // pred_fallthru
      _
    // Predicated region
    $region58: #{tpu_custom_call.1} parent=1 // pred_check
      _
    $region59: #{tpu_custom_call.1} parent=1 // pred_check_branch
      %138 = sbr.rel (0) target = $region61
    $region60: #{tpu_custom_call.1} parent=1 // pred_region
      _
    $region61: #{tpu_custom_call.1} parent=1 // pred_fallthru
      _
    // Predicated region
    $region62: #{tpu_custom_call.1} parent=1 // pred_check
      _
    $region63: #{tpu_custom_call.1} parent=1 // pred_check_branch
      %140 = sbr.rel (0) target = $region65
    $region64: #{tpu_custom_call.1} parent=1 // pred_region
      %141 = dma.done [#allocation5], 256
    $region65: #{tpu_custom_call.1} parent=1 // pred_fallthru
      _
    // Predicated region
    $region66: #{tpu_custom_call.1} parent=1 // pred_check
      _
    $region67: #{tpu_custom_call.1} parent=1 // pred_check_branch
      %143 = sbr.rel (0) target = $region69
    $region68: #{tpu_custom_call.1} parent=1 // pred_region
      %144 = dma.done [#allocation8], 512
    $region69: #{tpu_custom_call.1} parent=1 // pred_fallthru
      _
    // Predicated region
    $region70: #{tpu_custom_call.1} parent=1 // pred_check
      _
    $region71: #{tpu_custom_call.1} parent=1 // pred_check_branch
      %146 = sbr.rel (0) target = $region73
    $region72: #{tpu_custom_call.1} parent=1 // pred_region
      %147 = dma.done [#allocation8], 512
    $region73: #{tpu_custom_call.1} parent=1 // pred_fallthru
      _
    // Predicated region
    $region74: #{tpu_custom_call.1} parent=1 // pred_check
      _
    $region75: #{tpu_custom_call.1} parent=1 // pred_check_branch
      %149 = sbr.rel (0) target = $region77
    $region76: #{tpu_custom_call.1} parent=1 // pred_region
      %150 = dma.done [#allocation11], 512
    $region77: #{tpu_custom_call.1} parent=1 // pred_fallthru
      _
    // Predicated region
    $region78: #{tpu_custom_call.1} parent=1 // pred_check
      _
    $region79: #{tpu_custom_call.1} parent=1 // pred_check_branch
      %152 = sbr.rel (0) target = $region81
    $region80: #{tpu_custom_call.1} parent=1 // pred_region
      %153 = dma.done [#allocation11], 512
    $region81: #{tpu_custom_call.1} parent=1 // pred_fallthru
      _
    // Predicated region
    $region82: #{tpu_custom_call.1} parent=1 // pred_check
      _
    $region83: #{tpu_custom_call.1} parent=1 // pred_check_branch
      %155 = sbr.rel (0) target = $region85
    $region84: #{tpu_custom_call.1} parent=1 // pred_region
      %156 = dma.done [#allocation14], 16
    $region85: #{tpu_custom_call.1} parent=1 // pred_fallthru
      _
    // Predicated region
    $region86: #{tpu_custom_call.1} parent=1 // pred_check
      _
    $region87: #{tpu_custom_call.1} parent=1 // pred_check_branch
      %158 = sbr.rel (0) target = $region89
    $region88: #{tpu_custom_call.1} parent=1 // pred_region
      %159 = dma.done [#allocation14], 1024
    $region89: #{tpu_custom_call.1} parent=1 // pred_fallthru
      _
    // Predicated region
    $region90: #{tpu_custom_call.1} parent=1 // pred_check
      _
    $region91: #{tpu_custom_call.1} parent=1 // pred_check_branch
      %161 = sbr.rel (0) target = $region93
    $region92: #{tpu_custom_call.1} parent=1 // pred_region
      %162 = dma.done [#allocation17], 4096
    $region93: #{tpu_custom_call.1} parent=1 // pred_fallthru
      _
    %s163 = sld [smem:[#allocation3]]
    %v164 = vld [vmem:[#allocation4] sm:$0xff]
    %v165 = vld [vmem:[#allocation4 + $0x8] sm:$0xff]
    %v166 = vlaneseq
    %v167 = vand.u32 %v166, 127
    %v168 = vlaneseq
    %v169 = vshrl.u32 %v168, 7
    %v170 = vmul.u32 %v169, 8
    %v171 = vstv %s163
    %v172 = vadd.s32 %v170, %v171
    %vm173 = vcmp.eq.s32.totalorder %v167, %v172
    %v174 = vsel %vm173, 1.0, 0.0
    %vm175 = vcmask 130048
    %v177 = vsel %vm175, %v174, 0
    %179 = vmatprep.subr.mxu0 0.0
    %180 = vmatpush1.msra.mxu0 %v164
    %181 = vmatprep.subr.mxu0 0.0
    %182 = vmatpush1.msra.mxu0 %v165
    %183 = vmatprep.subr.mxu0 0.0
    %184 = vmatpush1.msra.mxu0 0.0
    %185 = vmatprep.subr.mxu0 0.0
    %186 = vmatpush1.msra.mxu0 0.0
    %187 = vmatprep.subr.mxu0 0.0
    %188 = vmatpush1.msra.mxu0 0.0
    %189 = vmatprep.subr.mxu0 0.0
    %190 = vmatpush1.msra.mxu0 0.0
    %191 = vmatprep.subr.mxu0 0.0
    %192 = vmatpush1.msra.mxu0 0.0
    %193 = vmatprep.subr.mxu0 0.0
    %194 = vmatpush1.msra.mxu0 0.0
    %195 = vmatprep.subr.mxu0 0.0
    %196 = vmatpush1.msra.mxu0 0.0
    %197 = vmatprep.subr.mxu0 0.0
    %198 = vmatpush1.msra.mxu0 0.0
    %199 = vmatprep.subr.mxu0 0.0
    %200 = vmatpush1.msra.mxu0 0.0
    %201 = vmatprep.subr.mxu0 0.0
    %202 = vmatpush1.msra.mxu0 0.0
    %203 = vmatprep.subr.mxu0 0.0
    %204 = vmatpush1.msra.mxu0 0.0
    %205 = vmatprep.subr.mxu0 0.0
    %206 = vmatpush1.msra.mxu0 0.0
    %207 = vmatprep.subr.mxu0 0.0
    %208 = vmatpush1.msra.mxu0 0.0
    %209 = vmatprep.subr.mxu0 0.0
    %210 = vmatpush1.msra.mxu0 0.0
    %211 = vmatprep.subr.mxu0 0.0
    %212 = vmatpush1.msra.mxu0 0.0
    %213 = vmatprep.subr.mxu0 0.0
    %214 = vmatpush1.msra.mxu0 0.0
    %215 = vmatprep.subr.mxu0 0.0
    %216 = vmatpush1.msra.mxu0 0.0
    %217 = vmatprep.subr.mxu0 0.0
    %218 = vmatpush1.msra.mxu0 0.0
    %219 = vmatprep.subr.mxu0 0.0
    %220 = vmatpush1.msra.mxu0 0.0
    %221 = vmatprep.subr.mxu0 0.0
    %222 = vmatpush1.msra.mxu0 0.0
    %223 = vmatprep.subr.mxu0 0.0
    %224 = vmatpush1.msra.mxu0 0.0
    %225 = vmatprep.subr.mxu0 0.0
    %226 = vmatpush1.msra.mxu0 0.0
    %227 = vmatprep.subr.mxu0 0.0
    %228 = vmatpush1.msra.mxu0 0.0
    %229 = vmatprep.subr.mxu0 0.0
    %230 = vmatpush1.msra.mxu0 0.0
    %231 = vmatprep.subr.mxu0 0.0
    %232 = vmatpush1.msra.mxu0 0.0
    %233 = vmatprep.subr.mxu0 0.0
    %234 = vmatpush1.msra.mxu0 0.0
    %235 = vmatprep.subr.mxu0 0.0
    %236 = vmatpush1.msra.mxu0 0.0
    %237 = vmatprep.subr.mxu0 0.0
    %238 = vmatpush1.msra.mxu0 0.0
    %239 = vmatprep.subr.mxu0 0.0
    %240 = vmatpush1.msra.mxu0 0.0
    %241 = vmatprep.subr.mxu0 0.0
    %242 = vmatpush1.msra.mxu0 0.0
    %243 = vmatprep.mubr.f32.mxu0 0.0
    %244 = vmatmul.mubr.f32.gmra.mrb[0].mxu0 %v177
    %v245 = vpop.f32.mrb[0].mxu0
    %v246 = vadd.f32 0.0, %v245
    %v247 = vpop.f32.mrb[0].mxu0
    %248 = vdwg.mxu0
    %v249 = vld [vmem:[#allocation9] sm:$0xff]
    %v250 = vld [vmem:[#allocation9 + $0x8] sm:$0xff]
    %v251 = vld [vmem:[#allocation9 + $0x10] sm:$0xff]
    %v252 = vld [vmem:[#allocation9 + $0x18] sm:$0xff]
    %v253 = vld [vmem:[%s5] sm:$0x1]
    %v255 = vlaneseq
    %v256 = vshrl.u32 %v255, 7
    %v257 = vsub.s32 0, %v256
    %v258 = vrot.slane %v253, %v257
    %vm260 = vcmask 261120
    %v262 = vsel %vm260, %v164, 0
    %v265 = vsel %vm260, %v165, 0
    %267 = vmatprep.subr.mxu0 0.0
    %268 = vmatpush1.msra.mxu0 %v249
    %269 = vmatprep.subr.mxu0 0.0
    %270 = vmatpush1.msra.mxu0 %v250
    %271 = vmatprep.subr.mxu0 0.0
    %272 = vmatpush1.msra.mxu0 %v251
    %273 = vmatprep.subr.mxu0 0.0
    %274 = vmatpush1.msra.mxu0 %v252
    %275 = vmatprep.subr.mxu0 0.0
    %276 = vmatpush1.msra.mxu0 0.0
    %277 = vmatprep.subr.mxu0 0.0
    %278 = vmatpush1.msra.mxu0 0.0
    %279 = vmatprep.subr.mxu0 0.0
    %280 = vmatpush1.msra.mxu0 0.0
    %281 = vmatprep.subr.mxu0 0.0
    %282 = vmatpush1.msra.mxu0 0.0
    %283 = vmatprep.subr.mxu0 0.0
    %284 = vmatpush1.msra.mxu0 0.0
    %285 = vmatprep.subr.mxu0 0.0
    %286 = vmatpush1.msra.mxu0 0.0
    %287 = vmatprep.subr.mxu0 0.0
    %288 = vmatpush1.msra.mxu0 0.0
    %289 = vmatprep.subr.mxu0 0.0
    %290 = vmatpush1.msra.mxu0 0.0
    %291 = vmatprep.subr.mxu0 0.0
    %292 = vmatpush1.msra.mxu0 0.0
    %293 = vmatprep.subr.mxu0 0.0
    %294 = vmatpush1.msra.mxu0 0.0
    %295 = vmatprep.subr.mxu0 0.0
    %296 = vmatpush1.msra.mxu0 0.0
    %297 = vmatprep.subr.mxu0 0.0
    %298 = vmatpush1.msra.mxu0 0.0
    %299 = vmatprep.subr.mxu0 0.0
    %300 = vmatpush1.msra.mxu0 0.0
    %301 = vmatprep.subr.mxu0 0.0
    %302 = vmatpush1.msra.mxu0 0.0
    %303 = vmatprep.subr.mxu0 0.0
    %304 = vmatpush1.msra.mxu0 0.0
    %305 = vmatprep.subr.mxu0 0.0
    %306 = vmatpush1.msra.mxu0 0.0
    %307 = vmatprep.subr.mxu0 0.0
    %308 = vmatpush1.msra.mxu0 0.0
    %309 = vmatprep.subr.mxu0 0.0
    %310 = vmatpush1.msra.mxu0 0.0
    %311 = vmatprep.subr.mxu0 0.0
    %312 = vmatpush1.msra.mxu0 0.0
    %313 = vmatprep.subr.mxu0 0.0
    %314 = vmatpush1.msra.mxu0 0.0
    %315 = vmatprep.subr.mxu0 0.0
    %316 = vmatpush1.msra.mxu0 0.0
    %317 = vmatprep.subr.mxu0 0.0
    %318 = vmatpush1.msra.mxu0 0.0
    %319 = vmatprep.subr.mxu0 0.0
    %320 = vmatpush1.msra.mxu0 0.0
    %321 = vmatprep.subr.mxu0 0.0
    %322 = vmatpush1.msra.mxu0 0.0
    %323 = vmatprep.subr.mxu0 0.0
    %324 = vmatpush1.msra.mxu0 0.0
    %325 = vmatprep.subr.mxu0 0.0
    %326 = vmatpush1.msra.mxu0 0.0
    %327 = vmatprep.subr.mxu0 0.0
    %328 = vmatpush1.msra.mxu0 0.0
    %329 = vmatprep.subr.mxu0 0.0
    %330 = vmatpush1.msra.mxu0 0.0
    %331 = vmatprep.mubr.f32.mxu0 0.0
    %332 = vmatmul.mubr.f32.gmra.mrb[0].mxu0 %v262
    %v333 = vpop.f32.mrb[0].mxu0
    %v334 = vadd.f32 %v258, %v333
    %v335 = vpop.f32.mrb[0].mxu0
    %336 = vmatprep.mubr.f32.mxu0 0.0
    %337 = vmatmul.mubr.f32.gmra.mrb[0].mxu0 %v265
    %v338 = vpop.f32.mrb[0].mxu0
    %v339 = vadd.f32 %v258, %v338
    %v340 = vpop.f32.mrb[0].mxu0
    %341 = vdwg.mxu0
    %v342 = vld [vmem:[#allocation10] sm:$0xff]
    %v343 = vld [vmem:[#allocation10 + $0x8] sm:$0xff]
    %v344 = vld [vmem:[#allocation10 + $0x10] sm:$0xff]
    %v345 = vld [vmem:[#allocation10 + $0x18] sm:$0xff]
    %v346 = vld [vmem:[%s7] sm:$0x1]
    %v348 = vlaneseq
    %v349 = vshrl.u32 %v348, 7
    %v350 = vsub.s32 0, %v349
    %v351 = vrot.slane %v346, %v350
    %353 = vmatprep.subr.mxu0 0.0
    %354 = vmatpush1.msra.mxu0 %v342
    %355 = vmatprep.subr.mxu0 0.0
    %356 = vmatpush1.msra.mxu0 %v343
    %357 = vmatprep.subr.mxu0 0.0
    %358 = vmatpush1.msra.mxu0 %v344
    %359 = vmatprep.subr.mxu0 0.0
    %360 = vmatpush1.msra.mxu0 %v345
    %361 = vmatprep.subr.mxu0 0.0
    %362 = vmatpush1.msra.mxu0 0.0
    %363 = vmatprep.subr.mxu0 0.0
    %364 = vmatpush1.msra.mxu0 0.0
    %365 = vmatprep.subr.mxu0 0.0
    %366 = vmatpush1.msra.mxu0 0.0
    %367 = vmatprep.subr.mxu0 0.0
    %368 = vmatpush1.msra.mxu0 0.0
    %369 = vmatprep.subr.mxu0 0.0
    %370 = vmatpush1.msra.mxu0 0.0
    %371 = vmatprep.subr.mxu0 0.0
    %372 = vmatpush1.msra.mxu0 0.0
    %373 = vmatprep.subr.mxu0 0.0
    %374 = vmatpush1.msra.mxu0 0.0
    %375 = vmatprep.subr.mxu0 0.0
    %376 = vmatpush1.msra.mxu0 0.0
    %377 = vmatprep.subr.mxu0 0.0
    %378 = vmatpush1.msra.mxu0 0.0
    %379 = vmatprep.subr.mxu0 0.0
    %380 = vmatpush1.msra.mxu0 0.0
    %381 = vmatprep.subr.mxu0 0.0
    %382 = vmatpush1.msra.mxu0 0.0
    %383 = vmatprep.subr.mxu0 0.0
    %384 = vmatpush1.msra.mxu0 0.0
    %385 = vmatprep.subr.mxu0 0.0
    %386 = vmatpush1.msra.mxu0 0.0
    %387 = vmatprep.subr.mxu0 0.0
    %388 = vmatpush1.msra.mxu0 0.0
    %389 = vmatprep.subr.mxu0 0.0
    %390 = vmatpush1.msra.mxu0 0.0
    %391 = vmatprep.subr.mxu0 0.0
    %392 = vmatpush1.msra.mxu0 0.0
    %393 = vmatprep.subr.mxu0 0.0
    %394 = vmatpush1.msra.mxu0 0.0
    %395 = vmatprep.subr.mxu0 0.0
    %396 = vmatpush1.msra.mxu0 0.0
    %397 = vmatprep.subr.mxu0 0.0
    %398 = vmatpush1.msra.mxu0 0.0
    %399 = vmatprep.subr.mxu0 0.0
    %400 = vmatpush1.msra.mxu0 0.0
    %401 = vmatprep.subr.mxu0 0.0
    %402 = vmatpush1.msra.mxu0 0.0
    %403 = vmatprep.subr.mxu0 0.0
    %404 = vmatpush1.msra.mxu0 0.0
    %405 = vmatprep.subr.mxu0 0.0
    %406 = vmatpush1.msra.mxu0 0.0
    %407 = vmatprep.subr.mxu0 0.0
    %408 = vmatpush1.msra.mxu0 0.0
    %409 = vmatprep.subr.mxu0 0.0
    %410 = vmatpush1.msra.mxu0 0.0
    %411 = vmatprep.subr.mxu0 0.0
    %412 = vmatpush1.msra.mxu0 0.0
    %413 = vmatprep.subr.mxu0 0.0
    %414 = vmatpush1.msra.mxu0 0.0
    %415 = vmatprep.subr.mxu0 0.0
    %416 = vmatpush1.msra.mxu0 0.0
    %417 = vmatprep.mubr.f32.mxu0 0.0
    %418 = vmatmul.mubr.f32.gmra.mrb[0].mxu0 %v262
    %v419 = vpop.f32.mrb[0].mxu0
    %v420 = vadd.f32 %v351, %v419
    %v421 = vpop.f32.mrb[0].mxu0
    %422 = vmatprep.mubr.f32.mxu0 0.0
    %423 = vmatmul.mubr.f32.gmra.mrb[0].mxu0 %v265
    %v424 = vpop.f32.mrb[0].mxu0
    %v425 = vadd.f32 %v351, %v424
    %v426 = vpop.f32.mrb[0].mxu0
    %427 = vdwg.mxu0
    %v428 = vld [vmem:[#allocation7] sm:$0xff]
    %v429 = vld [vmem:[#allocation7 + $0x8] sm:$0xff]
    %v430 = vld [vmem:[#allocation7 + $0x10] sm:$0xff]
    %v431 = vld [vmem:[#allocation7 + $0x18] sm:$0xff]
    %v432 = vld [vmem:[%s3] sm:$0x1]
    %v434 = vlaneseq
    %v435 = vshrl.u32 %v434, 7
    %v436 = vsub.s32 0, %v435
    %v437 = vrot.slane %v432, %v436
    %v440 = vsel %vm260, %v246, 0
    %442 = vmatprep.subr.mxu0 0.0
    %443 = vmatpush1.msra.mxu0 %v428
    %444 = vmatprep.subr.mxu0 0.0
    %445 = vmatpush1.msra.mxu0 %v429
    %446 = vmatprep.subr.mxu0 0.0
    %447 = vmatpush1.msra.mxu0 %v430
    %448 = vmatprep.subr.mxu0 0.0
    %449 = vmatpush1.msra.mxu0 %v431
    %450 = vmatprep.subr.mxu0 0.0
    %451 = vmatpush1.msra.mxu0 0.0
    %452 = vmatprep.subr.mxu0 0.0
    %453 = vmatpush1.msra.mxu0 0.0
    %454 = vmatprep.subr.mxu0 0.0
    %455 = vmatpush1.msra.mxu0 0.0
    %456 = vmatprep.subr.mxu0 0.0
    %457 = vmatpush1.msra.mxu0 0.0
    %458 = vmatprep.subr.mxu0 0.0
    %459 = vmatpush1.msra.mxu0 0.0
    %460 = vmatprep.subr.mxu0 0.0
    %461 = vmatpush1.msra.mxu0 0.0
    %462 = vmatprep.subr.mxu0 0.0
    %463 = vmatpush1.msra.mxu0 0.0
    %464 = vmatprep.subr.mxu0 0.0
    %465 = vmatpush1.msra.mxu0 0.0
    %466 = vmatprep.subr.mxu0 0.0
    %467 = vmatpush1.msra.mxu0 0.0
    %468 = vmatprep.subr.mxu0 0.0
    %469 = vmatpush1.msra.mxu0 0.0
    %470 = vmatprep.subr.mxu0 0.0
    %471 = vmatpush1.msra.mxu0 0.0
    %472 = vmatprep.subr.mxu0 0.0
    %473 = vmatpush1.msra.mxu0 0.0
    %474 = vmatprep.subr.mxu0 0.0
    %475 = vmatpush1.msra.mxu0 0.0
    %476 = vmatprep.subr.mxu0 0.0
    %477 = vmatpush1.msra.mxu0 0.0
    %478 = vmatprep.subr.mxu0 0.0
    %479 = vmatpush1.msra.mxu0 0.0
    %480 = vmatprep.subr.mxu0 0.0
    %481 = vmatpush1.msra.mxu0 0.0
    %482 = vmatprep.subr.mxu0 0.0
    %483 = vmatpush1.msra.mxu0 0.0
    %484 = vmatprep.subr.mxu0 0.0
    %485 = vmatpush1.msra.mxu0 0.0
    %486 = vmatprep.subr.mxu0 0.0
    %487 = vmatpush1.msra.mxu0 0.0
    %488 = vmatprep.subr.mxu0 0.0
    %489 = vmatpush1.msra.mxu0 0.0
    %490 = vmatprep.subr.mxu0 0.0
    %491 = vmatpush1.msra.mxu0 0.0
    %492 = vmatprep.subr.mxu0 0.0
    %493 = vmatpush1.msra.mxu0 0.0
    %494 = vmatprep.subr.mxu0 0.0
    %495 = vmatpush1.msra.mxu0 0.0
    %496 = vmatprep.subr.mxu0 0.0
    %497 = vmatpush1.msra.mxu0 0.0
    %498 = vmatprep.subr.mxu0 0.0
    %499 = vmatpush1.msra.mxu0 0.0
    %500 = vmatprep.subr.mxu0 0.0
    %501 = vmatpush1.msra.mxu0 0.0
    %502 = vmatprep.subr.mxu0 0.0
    %503 = vmatpush1.msra.mxu0 0.0
    %504 = vmatprep.subr.mxu0 0.0
    %505 = vmatpush1.msra.mxu0 0.0
    %506 = vmatprep.mubr.f32.mxu0 0.0
    %507 = vmatmul.mubr.f32.gmra.mrb[0].mxu0 %v440
    %v508 = vpop.f32.mrb[0].mxu0
    %v509 = vadd.f32 %v437, %v508
    %v510 = vpop.f32.mrb[0].mxu0
    %511 = vdwg.mxu0
    %v514 = vunpack.c.l.s4 1966171168
    %v515 = vunpack.c.0.s8 %v514
    %v516 = vlaneseq
    %v517 = vshrl.u32 %v516, 7
    %v518 = vsub.s32 %v515, %v517
    %v519 = vrot.slane %v509, %v518
    %v520 = vcombine.high %v519, %v519
    %v522 = vunpack.c.l.s4 1966171168
    %v523 = vunpack.c.0.s8 %v522
    %v524 = vlaneseq
    %v525 = vshrl.u32 %v524, 7
    %v526 = vsub.s32 %v523, %v525
    %v527 = vrot.slane %v519, %v526
    %v529 = vunpack.c.l.s4 1966171168
    %v530 = vunpack.c.0.s8 %v529
    %v531 = vlaneseq
    %v532 = vshrl.u32 %v531, 7
    %v533 = vsub.s32 %v530, %v532
    %v534 = vrot.slane %v520, %v533
    %v535 = vsel %vm260, %v527, 0
    %v538 = vsel %vm260, %v334, 0
    %540 = vmatprep.subr.mxu0 0.0
    %541 = vmatpush1.xpose.msra.mxu0 %v538
    %542 = vmatprep.subr.mxu0 0.0
    %543 = vmatpush1.xpose.msra.mxu0 0.0
    %544 = vmatprep.subr.mxu0 0.0
    %545 = vmatpush1.xpose.msra.mxu0 0.0
    %546 = vmatprep.subr.mxu0 0.0
    %547 = vmatpush1.xpose.msra.mxu0 0.0
    %548 = vmatprep.subr.mxu0 0.0
    %549 = vmatpush1.xpose.msra.mxu0 0.0
    %550 = vmatprep.subr.mxu0 0.0
    %551 = vmatpush1.xpose.msra.mxu0 0.0
    %552 = vmatprep.subr.mxu0 0.0
    %553 = vmatpush1.xpose.msra.mxu0 0.0
    %554 = vmatprep.subr.mxu0 0.0
    %555 = vmatpush1.xpose.msra.mxu0 0.0
    %556 = vmatprep.subr.mxu0 0.0
    %557 = vmatpush1.xpose.msra.mxu0 0.0
    %558 = vmatprep.subr.mxu0 0.0
    %559 = vmatpush1.xpose.msra.mxu0 0.0
    %560 = vmatprep.subr.mxu0 0.0
    %561 = vmatpush1.xpose.msra.mxu0 0.0
    %562 = vmatprep.subr.mxu0 0.0
    %563 = vmatpush1.xpose.msra.mxu0 0.0
    %564 = vmatprep.subr.mxu0 0.0
    %565 = vmatpush1.xpose.msra.mxu0 0.0
    %566 = vmatprep.subr.mxu0 0.0
    %567 = vmatpush1.xpose.msra.mxu0 0.0
    %568 = vmatprep.subr.mxu0 0.0
    %569 = vmatpush1.xpose.msra.mxu0 0.0
    %570 = vmatprep.subr.mxu0 0.0
    %571 = vmatpush1.xpose.msra.mxu0 0.0
    %572 = vmatprep.subr.mxu0 0.0
    %573 = vmatpush1.xpose.msra.mxu0 0.0
    %574 = vmatprep.subr.mxu0 0.0
    %575 = vmatpush1.xpose.msra.mxu0 0.0
    %576 = vmatprep.subr.mxu0 0.0
    %577 = vmatpush1.xpose.msra.mxu0 0.0
    %578 = vmatprep.subr.mxu0 0.0
    %579 = vmatpush1.xpose.msra.mxu0 0.0
    %580 = vmatprep.subr.mxu0 0.0
    %581 = vmatpush1.xpose.msra.mxu0 0.0
    %582 = vmatprep.subr.mxu0 0.0
    %583 = vmatpush1.xpose.msra.mxu0 0.0
    %584 = vmatprep.subr.mxu0 0.0
    %585 = vmatpush1.xpose.msra.mxu0 0.0
    %586 = vmatprep.subr.mxu0 0.0
    %587 = vmatpush1.xpose.msra.mxu0 0.0
    %588 = vmatprep.subr.mxu0 0.0
    %589 = vmatpush1.xpose.msra.mxu0 0.0
    %590 = vmatprep.subr.mxu0 0.0
    %591 = vmatpush1.xpose.msra.mxu0 0.0
    %592 = vmatprep.subr.mxu0 0.0
    %593 = vmatpush1.xpose.msra.mxu0 0.0
    %594 = vmatprep.subr.mxu0 0.0
    %595 = vmatpush1.xpose.msra.mxu0 0.0
    %596 = vmatprep.subr.mxu0 0.0
    %597 = vmatpush1.xpose.msra.mxu0 0.0
    %598 = vmatprep.subr.mxu0 0.0
    %599 = vmatpush1.xpose.msra.mxu0 0.0
    %600 = vmatprep.subr.mxu0 0.0
    %601 = vmatpush1.xpose.msra.mxu0 0.0
    %602 = vmatprep.subr.mxu0 0.0
    %603 = vmatpush1.xpose.msra.mxu0 0.0
    %604 = vmatprep.mubr.f32.mxu0 0.0
    %605 = vmatmul.mubr.f32.gmra.mrb[0].mxu0 %v535
    %v606 = vpop.f32.mrb[0].mxu0
    %v607 = vadd.f32 0.0, %v606
    %v608 = vpop.f32.mrb[0].mxu0
    %609 = vdwg.mxu0
    %v610 = vsel %vm260, %v534, 0
    %v613 = vsel %vm260, %v339, 0
    %615 = vmatprep.subr.mxu0 0.0
    %616 = vmatpush1.xpose.msra.mxu0 %v613
    %617 = vmatprep.subr.mxu0 0.0
    %618 = vmatpush1.xpose.msra.mxu0 0.0
    %619 = vmatprep.subr.mxu0 0.0
    %620 = vmatpush1.xpose.msra.mxu0 0.0
    %621 = vmatprep.subr.mxu0 0.0
    %622 = vmatpush1.xpose.msra.mxu0 0.0
    %623 = vmatprep.subr.mxu0 0.0
    %624 = vmatpush1.xpose.msra.mxu0 0.0
    %625 = vmatprep.subr.mxu0 0.0
    %626 = vmatpush1.xpose.msra.mxu0 0.0
    %627 = vmatprep.subr.mxu0 0.0
    %628 = vmatpush1.xpose.msra.mxu0 0.0
    %629 = vmatprep.subr.mxu0 0.0
    %630 = vmatpush1.xpose.msra.mxu0 0.0
    %631 = vmatprep.subr.mxu0 0.0
    %632 = vmatpush1.xpose.msra.mxu0 0.0
    %633 = vmatprep.subr.mxu0 0.0
    %634 = vmatpush1.xpose.msra.mxu0 0.0
    %635 = vmatprep.subr.mxu0 0.0
    %636 = vmatpush1.xpose.msra.mxu0 0.0
    %637 = vmatprep.subr.mxu0 0.0
    %638 = vmatpush1.xpose.msra.mxu0 0.0
    %639 = vmatprep.subr.mxu0 0.0
    %640 = vmatpush1.xpose.msra.mxu0 0.0
    %641 = vmatprep.subr.mxu0 0.0
    %642 = vmatpush1.xpose.msra.mxu0 0.0
    %643 = vmatprep.subr.mxu0 0.0
    %644 = vmatpush1.xpose.msra.mxu0 0.0
    %645 = vmatprep.subr.mxu0 0.0
    %646 = vmatpush1.xpose.msra.mxu0 0.0
    %647 = vmatprep.subr.mxu0 0.0
    %648 = vmatpush1.xpose.msra.mxu0 0.0
    %649 = vmatprep.subr.mxu0 0.0
    %650 = vmatpush1.xpose.msra.mxu0 0.0
    %651 = vmatprep.subr.mxu0 0.0
    %652 = vmatpush1.xpose.msra.mxu0 0.0
    %653 = vmatprep.subr.mxu0 0.0
    %654 = vmatpush1.xpose.msra.mxu0 0.0
    %655 = vmatprep.subr.mxu0 0.0
    %656 = vmatpush1.xpose.msra.mxu0 0.0
    %657 = vmatprep.subr.mxu0 0.0
    %658 = vmatpush1.xpose.msra.mxu0 0.0
    %659 = vmatprep.subr.mxu0 0.0
    %660 = vmatpush1.xpose.msra.mxu0 0.0
    %661 = vmatprep.subr.mxu0 0.0
    %662 = vmatpush1.xpose.msra.mxu0 0.0
    %663 = vmatprep.subr.mxu0 0.0
    %664 = vmatpush1.xpose.msra.mxu0 0.0
    %665 = vmatprep.subr.mxu0 0.0
    %666 = vmatpush1.xpose.msra.mxu0 0.0
    %667 = vmatprep.subr.mxu0 0.0
    %668 = vmatpush1.xpose.msra.mxu0 0.0
    %669 = vmatprep.subr.mxu0 0.0
    %670 = vmatpush1.xpose.msra.mxu0 0.0
    %671 = vmatprep.subr.mxu0 0.0
    %672 = vmatpush1.xpose.msra.mxu0 0.0
    %673 = vmatprep.subr.mxu0 0.0
    %674 = vmatpush1.xpose.msra.mxu0 0.0
    %675 = vmatprep.subr.mxu0 0.0
    %676 = vmatpush1.xpose.msra.mxu0 0.0
    %677 = vmatprep.subr.mxu0 0.0
    %678 = vmatpush1.xpose.msra.mxu0 0.0
    %679 = vmatprep.mubr.f32.mxu0 0.0
    %680 = vmatmul.mubr.f32.gmra.mrb[0].mxu0 %v610
    %v681 = vpop.f32.mrb[0].mxu0
    %v682 = vadd.f32 0.0, %v681
    %v683 = vpop.f32.mrb[0].mxu0
    %684 = vdwg.mxu0
    %vm685 = vcmask 57344
    %v686 = vsel %vm685, %v607, -inf
    %687 = vmax.xlane.f32.xlu0 %v686
    %v688 = vpop.xlane.xlu0 %687
    %v689 = vsel %vm685, %v682, -inf
    %690 = vmax.xlane.f32.xlu0 %v689
    %v691 = vpop.xlane.xlu0 %690
    %v692 = vsub.f32 %v607, %v688
    %v693 = vsub.f32 %v682, %v691
    %v694 = vmul.f32 %v692, 1.442695
    %v695 = vpow.pop %v694
    %v696 = vmul.f32 %v693, 1.442695
    %v697 = vpow.pop %v696
    %v698 = vsel %vm685, %v695, 0.0
    %699 = vadd.xlane.f32.xlu0 %v698
    %v700 = vpop.xlane.xlu0 %699
    %v701 = vsel %vm685, %v697, 0.0
    %702 = vadd.xlane.f32.xlu0 %v701
    %v703 = vpop.xlane.xlu0 %702
    %v704 = vrcp.pop %v700
    %v705 = vrcp.pop %v703
    %v706 = vmul.f32 %v695, %v704
    %v707 = vmul.f32 %v697, %v705
    %vm708 = vcmask 64512
    %v710 = vsel %vm708, %v706, 0
    %712 = vmatprep.subr.mxu0 0.0
    %713 = vmatpush1.msra.mxu0 %v420
    %714 = vmatprep.subr.mxu0 0.0
    %715 = vmatpush1.msra.mxu0 0.0
    %716 = vmatprep.subr.mxu0 0.0
    %717 = vmatpush1.msra.mxu0 0.0
    %718 = vmatprep.subr.mxu0 0.0
    %719 = vmatpush1.msra.mxu0 0.0
    %720 = vmatprep.subr.mxu0 0.0
    %721 = vmatpush1.msra.mxu0 0.0
    %722 = vmatprep.subr.mxu0 0.0
    %723 = vmatpush1.msra.mxu0 0.0
    %724 = vmatprep.subr.mxu0 0.0
    %725 = vmatpush1.msra.mxu0 0.0
    %726 = vmatprep.subr.mxu0 0.0
    %727 = vmatpush1.msra.mxu0 0.0
    %728 = vmatprep.subr.mxu0 0.0
    %729 = vmatpush1.msra.mxu0 0.0
    %730 = vmatprep.subr.mxu0 0.0
    %731 = vmatpush1.msra.mxu0 0.0
    %732 = vmatprep.subr.mxu0 0.0
    %733 = vmatpush1.msra.mxu0 0.0
    %734 = vmatprep.subr.mxu0 0.0
    %735 = vmatpush1.msra.mxu0 0.0
    %736 = vmatprep.subr.mxu0 0.0
    %737 = vmatpush1.msra.mxu0 0.0
    %738 = vmatprep.subr.mxu0 0.0
    %739 = vmatpush1.msra.mxu0 0.0
    %740 = vmatprep.subr.mxu0 0.0
    %741 = vmatpush1.msra.mxu0 0.0
    %742 = vmatprep.subr.mxu0 0.0
    %743 = vmatpush1.msra.mxu0 0.0
    %744 = vmatprep.subr.mxu0 0.0
    %745 = vmatpush1.msra.mxu0 0.0
    %746 = vmatprep.subr.mxu0 0.0
    %747 = vmatpush1.msra.mxu0 0.0
    %748 = vmatprep.subr.mxu0 0.0
    %749 = vmatpush1.msra.mxu0 0.0
    %750 = vmatprep.subr.mxu0 0.0
    %751 = vmatpush1.msra.mxu0 0.0
    %752 = vmatprep.subr.mxu0 0.0
    %753 = vmatpush1.msra.mxu0 0.0
    %754 = vmatprep.subr.mxu0 0.0
    %755 = vmatpush1.msra.mxu0 0.0
    %756 = vmatprep.subr.mxu0 0.0
    %757 = vmatpush1.msra.mxu0 0.0
    %758 = vmatprep.subr.mxu0 0.0
    %759 = vmatpush1.msra.mxu0 0.0
    %760 = vmatprep.subr.mxu0 0.0
    %761 = vmatpush1.msra.mxu0 0.0
    %762 = vmatprep.subr.mxu0 0.0
    %763 = vmatpush1.msra.mxu0 0.0
    %764 = vmatprep.subr.mxu0 0.0
    %765 = vmatpush1.msra.mxu0 0.0
    %766 = vmatprep.subr.mxu0 0.0
    %767 = vmatpush1.msra.mxu0 0.0
    %768 = vmatprep.subr.mxu0 0.0
    %769 = vmatpush1.msra.mxu0 0.0
    %770 = vmatprep.subr.mxu0 0.0
    %771 = vmatpush1.msra.mxu0 0.0
    %772 = vmatprep.subr.mxu0 0.0
    %773 = vmatpush1.msra.mxu0 0.0
    %774 = vmatprep.subr.mxu0 0.0
    %775 = vmatpush1.msra.mxu0 0.0
    %776 = vmatprep.mubr.f32.mxu0 0.0
    %777 = vmatmul.mubr.f32.gmra.mrb[0].mxu0 %v710
    %v778 = vpop.f32.mrb[0].mxu0
    %v779 = vadd.f32 0.0, %v778
    %v780 = vpop.f32.mrb[0].mxu0
    %781 = vdwg.mxu0
    %v783 = vsel %vm708, %v707, 0
    %785 = vmatprep.subr.mxu0 0.0
    %786 = vmatpush1.msra.mxu0 %v425
    %787 = vmatprep.subr.mxu0 0.0
    %788 = vmatpush1.msra.mxu0 0.0
    %789 = vmatprep.subr.mxu0 0.0
    %790 = vmatpush1.msra.mxu0 0.0
    %791 = vmatprep.subr.mxu0 0.0
    %792 = vmatpush1.msra.mxu0 0.0
    %793 = vmatprep.subr.mxu0 0.0
    %794 = vmatpush1.msra.mxu0 0.0
    %795 = vmatprep.subr.mxu0 0.0
    %796 = vmatpush1.msra.mxu0 0.0
    %797 = vmatprep.subr.mxu0 0.0
    %798 = vmatpush1.msra.mxu0 0.0
    %799 = vmatprep.subr.mxu0 0.0
    %800 = vmatpush1.msra.mxu0 0.0
    %801 = vmatprep.subr.mxu0 0.0
    %802 = vmatpush1.msra.mxu0 0.0
    %803 = vmatprep.subr.mxu0 0.0
    %804 = vmatpush1.msra.mxu0 0.0
    %805 = vmatprep.subr.mxu0 0.0
    %806 = vmatpush1.msra.mxu0 0.0
    %807 = vmatprep.subr.mxu0 0.0
    %808 = vmatpush1.msra.mxu0 0.0
    %809 = vmatprep.subr.mxu0 0.0
    %810 = vmatpush1.msra.mxu0 0.0
    %811 = vmatprep.subr.mxu0 0.0
    %812 = vmatpush1.msra.mxu0 0.0
    %813 = vmatprep.subr.mxu0 0.0
    %814 = vmatpush1.msra.mxu0 0.0
    %815 = vmatprep.subr.mxu0 0.0
    %816 = vmatpush1.msra.mxu0 0.0
    %817 = vmatprep.subr.mxu0 0.0
    %818 = vmatpush1.msra.mxu0 0.0
    %819 = vmatprep.subr.mxu0 0.0
    %820 = vmatpush1.msra.mxu0 0.0
    %821 = vmatprep.subr.mxu0 0.0
    %822 = vmatpush1.msra.mxu0 0.0
    %823 = vmatprep.subr.mxu0 0.0
    %824 = vmatpush1.msra.mxu0 0.0
    %825 = vmatprep.subr.mxu0 0.0
    %826 = vmatpush1.msra.mxu0 0.0
    %827 = vmatprep.subr.mxu0 0.0
    %828 = vmatpush1.msra.mxu0 0.0
    %829 = vmatprep.subr.mxu0 0.0
    %830 = vmatpush1.msra.mxu0 0.0
    %831 = vmatprep.subr.mxu0 0.0
    %832 = vmatpush1.msra.mxu0 0.0
    %833 = vmatprep.subr.mxu0 0.0
    %834 = vmatpush1.msra.mxu0 0.0
    %835 = vmatprep.subr.mxu0 0.0
    %836 = vmatpush1.msra.mxu0 0.0
    %837 = vmatprep.subr.mxu0 0.0
    %838 = vmatpush1.msra.mxu0 0.0
    %839 = vmatprep.subr.mxu0 0.0
    %840 = vmatpush1.msra.mxu0 0.0
    %841 = vmatprep.subr.mxu0 0.0
    %842 = vmatpush1.msra.mxu0 0.0
    %843 = vmatprep.subr.mxu0 0.0
    %844 = vmatpush1.msra.mxu0 0.0
    %845 = vmatprep.subr.mxu0 0.0
    %846 = vmatpush1.msra.mxu0 0.0
    %847 = vmatprep.subr.mxu0 0.0
    %848 = vmatpush1.msra.mxu0 0.0
    %849 = vmatprep.mubr.f32.mxu0 0.0
    %850 = vmatmul.mubr.f32.gmra.mrb[0].mxu0 %v783
    %v851 = vpop.f32.mrb[0].mxu0
    %v852 = vadd.f32 0.0, %v851
    %v853 = vpop.f32.mrb[0].mxu0
    %854 = vdwg.mxu0
    %v855 = vld [vmem:[#allocation12] sm:$0xff]
    %v856 = vld [vmem:[#allocation12 + $0x8] sm:$0xff]
    %v857 = vld [vmem:[#allocation12 + $0x10] sm:$0xff]
    %v858 = vld [vmem:[#allocation12 + $0x18] sm:$0xff]
    %v859 = vld [vmem:[#allocation13] sm:$0x1]
    %v861 = vlaneseq
    %v862 = vshrl.u32 %v861, 7
    %v863 = vsub.s32 0, %v862
    %v864 = vrot.slane %v859, %v863
    %v868 = vrot.slane %v852, 7
    %vm869 = vcmask 1041409
    %v870 = vsel %vm869, %v868, %v779
    %v871 = vsel %vm260, %v870, 0
    %873 = vmatprep.subr.mxu0 0.0
    %874 = vmatpush1.msra.mxu0 %v855
    %875 = vmatprep.subr.mxu0 0.0
    %876 = vmatpush1.msra.mxu0 %v856
    %877 = vmatprep.subr.mxu0 0.0
    %878 = vmatpush1.msra.mxu0 %v857
    %879 = vmatprep.subr.mxu0 0.0
    %880 = vmatpush1.msra.mxu0 %v858
    %881 = vmatprep.subr.mxu0 0.0
    %882 = vmatpush1.msra.mxu0 0.0
    %883 = vmatprep.subr.mxu0 0.0
    %884 = vmatpush1.msra.mxu0 0.0
    %885 = vmatprep.subr.mxu0 0.0
    %886 = vmatpush1.msra.mxu0 0.0
    %887 = vmatprep.subr.mxu0 0.0
    %888 = vmatpush1.msra.mxu0 0.0
    %889 = vmatprep.subr.mxu0 0.0
    %890 = vmatpush1.msra.mxu0 0.0
    %891 = vmatprep.subr.mxu0 0.0
    %892 = vmatpush1.msra.mxu0 0.0
    %893 = vmatprep.subr.mxu0 0.0
    %894 = vmatpush1.msra.mxu0 0.0
    %895 = vmatprep.subr.mxu0 0.0
    %896 = vmatpush1.msra.mxu0 0.0
    %897 = vmatprep.subr.mxu0 0.0
    %898 = vmatpush1.msra.mxu0 0.0
    %899 = vmatprep.subr.mxu0 0.0
    %900 = vmatpush1.msra.mxu0 0.0
    %901 = vmatprep.subr.mxu0 0.0
    %902 = vmatpush1.msra.mxu0 0.0
    %903 = vmatprep.subr.mxu0 0.0
    %904 = vmatpush1.msra.mxu0 0.0
    %905 = vmatprep.subr.mxu0 0.0
    %906 = vmatpush1.msra.mxu0 0.0
    %907 = vmatprep.subr.mxu0 0.0
    %908 = vmatpush1.msra.mxu0 0.0
    %909 = vmatprep.subr.mxu0 0.0
    %910 = vmatpush1.msra.mxu0 0.0
    %911 = vmatprep.subr.mxu0 0.0
    %912 = vmatpush1.msra.mxu0 0.0
    %913 = vmatprep.subr.mxu0 0.0
    %914 = vmatpush1.msra.mxu0 0.0
    %915 = vmatprep.subr.mxu0 0.0
    %916 = vmatpush1.msra.mxu0 0.0
    %917 = vmatprep.subr.mxu0 0.0
    %918 = vmatpush1.msra.mxu0 0.0
    %919 = vmatprep.subr.mxu0 0.0
    %920 = vmatpush1.msra.mxu0 0.0
    %921 = vmatprep.subr.mxu0 0.0
    %922 = vmatpush1.msra.mxu0 0.0
    %923 = vmatprep.subr.mxu0 0.0
    %924 = vmatpush1.msra.mxu0 0.0
    %925 = vmatprep.subr.mxu0 0.0
    %926 = vmatpush1.msra.mxu0 0.0
    %927 = vmatprep.subr.mxu0 0.0
    %928 = vmatpush1.msra.mxu0 0.0
    %929 = vmatprep.subr.mxu0 0.0
    %930 = vmatpush1.msra.mxu0 0.0
    %931 = vmatprep.subr.mxu0 0.0
    %932 = vmatpush1.msra.mxu0 0.0
    %933 = vmatprep.subr.mxu0 0.0
    %934 = vmatpush1.msra.mxu0 0.0
    %935 = vmatprep.subr.mxu0 0.0
    %936 = vmatpush1.msra.mxu0 0.0
    %937 = vmatprep.mubr.f32.mxu0 0.0
    %938 = vmatmul.mubr.f32.gmra.mrb[0].mxu0 %v871
    %v939 = vpop.f32.mrb[0].mxu0
    %v940 = vadd.f32 %v864, %v939
    %v941 = vpop.f32.mrb[0].mxu0
    %942 = vdwg.mxu0
    %943 = vst [vmem:[#allocation19] sm:$0x3] %v940
    %v944 = vld [vmem:[%s10] sm:$0xff]
    %v945 = vld [vmem:[%s10 + $0x8] sm:$0xff]
    %v946 = vld [vmem:[%s10 + $0x10] sm:$0xff]
    %v947 = vld [vmem:[%s10 + $0x18] sm:$0xff]
    %v948 = vld [vmem:[%s11] sm:$0x1]
    %v950 = vlaneseq
    %v951 = vshrl.u32 %v950, 7
    %v952 = vsub.s32 0, %v951
    %v953 = vrot.slane %v948, %v952
    %955 = vmatprep.subr.mxu0 0.0
    %956 = vmatpush1.msra.mxu0 %v944
    %957 = vmatprep.subr.mxu0 0.0
    %958 = vmatpush1.msra.mxu0 %v945
    %959 = vmatprep.subr.mxu0 0.0
    %960 = vmatpush1.msra.mxu0 %v946
    %961 = vmatprep.subr.mxu0 0.0
    %962 = vmatpush1.msra.mxu0 %v947
    %963 = vmatprep.subr.mxu0 0.0
    %964 = vmatpush1.msra.mxu0 0.0
    %965 = vmatprep.subr.mxu0 0.0
    %966 = vmatpush1.msra.mxu0 0.0
    %967 = vmatprep.subr.mxu0 0.0
    %968 = vmatpush1.msra.mxu0 0.0
    %969 = vmatprep.subr.mxu0 0.0
    %970 = vmatpush1.msra.mxu0 0.0
    %971 = vmatprep.subr.mxu0 0.0
    %972 = vmatpush1.msra.mxu0 0.0
    %973 = vmatprep.subr.mxu0 0.0
    %974 = vmatpush1.msra.mxu0 0.0
    %975 = vmatprep.subr.mxu0 0.0
    %976 = vmatpush1.msra.mxu0 0.0
    %977 = vmatprep.subr.mxu0 0.0
    %978 = vmatpush1.msra.mxu0 0.0
    %979 = vmatprep.subr.mxu0 0.0
    %980 = vmatpush1.msra.mxu0 0.0
    %981 = vmatprep.subr.mxu0 0.0
    %982 = vmatpush1.msra.mxu0 0.0
    %983 = vmatprep.subr.mxu0 0.0
    %984 = vmatpush1.msra.mxu0 0.0
    %985 = vmatprep.subr.mxu0 0.0
    %986 = vmatpush1.msra.mxu0 0.0
    %987 = vmatprep.subr.mxu0 0.0
    %988 = vmatpush1.msra.mxu0 0.0
    %989 = vmatprep.subr.mxu0 0.0
    %990 = vmatpush1.msra.mxu0 0.0
    %991 = vmatprep.subr.mxu0 0.0
    %992 = vmatpush1.msra.mxu0 0.0
    %993 = vmatprep.subr.mxu0 0.0
    %994 = vmatpush1.msra.mxu0 0.0
    %995 = vmatprep.subr.mxu0 0.0
    %996 = vmatpush1.msra.mxu0 0.0
    %997 = vmatprep.subr.mxu0 0.0
    %998 = vmatpush1.msra.mxu0 0.0
    %999 = vmatprep.subr.mxu0 0.0
    %1000 = vmatpush1.msra.mxu0 0.0
    %1001 = vmatprep.subr.mxu0 0.0
    %1002 = vmatpush1.msra.mxu0 0.0
    %1003 = vmatprep.subr.mxu0 0.0
    %1004 = vmatpush1.msra.mxu0 0.0
    %1005 = vmatprep.subr.mxu0 0.0
    %1006 = vmatpush1.msra.mxu0 0.0
    %1007 = vmatprep.subr.mxu0 0.0
    %1008 = vmatpush1.msra.mxu0 0.0
    %1009 = vmatprep.subr.mxu0 0.0
    %1010 = vmatpush1.msra.mxu0 0.0
    %1011 = vmatprep.subr.mxu0 0.0
    %1012 = vmatpush1.msra.mxu0 0.0
    %1013 = vmatprep.subr.mxu0 0.0
    %1014 = vmatpush1.msra.mxu0 0.0
    %1015 = vmatprep.subr.mxu0 0.0
    %1016 = vmatpush1.msra.mxu0 0.0
    %1017 = vmatprep.subr.mxu0 0.0
    %1018 = vmatpush1.msra.mxu0 0.0
    %1019 = vmatprep.mubr.f32.mxu0 0.0
    %1020 = vmatmul.mubr.f32.gmra.mrb[0].mxu0 %v440
    %v1021 = vpop.f32.mrb[0].mxu0
    %v1022 = vadd.f32 %v953, %v1021
    %v1023 = vpop.f32.mrb[0].mxu0
    %1024 = vdwg.mxu0
    %v1025 = vmax.f32 %v1022, 0.0
    %v1026 = vld [vmem:[#allocation15] sm:$0xff]
    %v1027 = vld [vmem:[#allocation15 + $0x8] sm:$0xff]
    %v1028 = vld [vmem:[#allocation15 + $0x10] sm:$0xff]
    %v1029 = vld [vmem:[#allocation15 + $0x18] sm:$0xff]
    %v1030 = vld [vmem:[#allocation15 + $0x20] sm:$0xff]
    %v1031 = vld [vmem:[#allocation15 + $0x28] sm:$0xff]
    %v1032 = vld [vmem:[#allocation15 + $0x30] sm:$0xff]
    %v1033 = vld [vmem:[#allocation15 + $0x38] sm:$0xff]
    %v1034 = vld [vmem:[%s13] sm:$0x3]
    %v1036 = vlaneseq
    %v1037 = vshrl.u32 %v1036, 7
    %v1038 = vsub.s32 0, %v1037
    %v1039 = vrot.slane %v1034, %v1038
    %v1040 = vlaneseq
    %v1041 = vshrl.u32 %v1040, 7
    %v1042 = vsub.s32 1, %v1041
    %v1043 = vrot.slane %v1034, %v1042
    %v1047 = vsel %vm260, %v1025, 0
    %1049 = vmatprep.subr.mxu0 %v1027
    %1050 = vmatpush1.msra.mxu0 %v1026
    %1051 = vmatprep.subr.mxu0 %v1029
    %1052 = vmatpush1.msra.mxu0 %v1028
    %1053 = vmatprep.subr.mxu0 %v1031
    %1054 = vmatpush1.msra.mxu0 %v1030
    %1055 = vmatprep.subr.mxu0 %v1033
    %1056 = vmatpush1.msra.mxu0 %v1032
    %1057 = vmatprep.subr.mxu0 0.0
    %1058 = vmatpush1.msra.mxu0 0.0
    %1059 = vmatprep.subr.mxu0 0.0
    %1060 = vmatpush1.msra.mxu0 0.0
    %1061 = vmatprep.subr.mxu0 0.0
    %1062 = vmatpush1.msra.mxu0 0.0
    %1063 = vmatprep.subr.mxu0 0.0
    %1064 = vmatpush1.msra.mxu0 0.0
    %1065 = vmatprep.subr.mxu0 0.0
    %1066 = vmatpush1.msra.mxu0 0.0
    %1067 = vmatprep.subr.mxu0 0.0
    %1068 = vmatpush1.msra.mxu0 0.0
    %1069 = vmatprep.subr.mxu0 0.0
    %1070 = vmatpush1.msra.mxu0 0.0
    %1071 = vmatprep.subr.mxu0 0.0
    %1072 = vmatpush1.msra.mxu0 0.0
    %1073 = vmatprep.subr.mxu0 0.0
    %1074 = vmatpush1.msra.mxu0 0.0
    %1075 = vmatprep.subr.mxu0 0.0
    %1076 = vmatpush1.msra.mxu0 0.0
    %1077 = vmatprep.subr.mxu0 0.0
    %1078 = vmatpush1.msra.mxu0 0.0
    %1079 = vmatprep.subr.mxu0 0.0
    %1080 = vmatpush1.msra.mxu0 0.0
    %1081 = vmatprep.subr.mxu0 0.0
    %1082 = vmatpush1.msra.mxu0 0.0
    %1083 = vmatprep.subr.mxu0 0.0
    %1084 = vmatpush1.msra.mxu0 0.0
    %1085 = vmatprep.subr.mxu0 0.0
    %1086 = vmatpush1.msra.mxu0 0.0
    %1087 = vmatprep.subr.mxu0 0.0
    %1088 = vmatpush1.msra.mxu0 0.0
    %1089 = vmatprep.subr.mxu0 0.0
    %1090 = vmatpush1.msra.mxu0 0.0
    %1091 = vmatprep.subr.mxu0 0.0
    %1092 = vmatpush1.msra.mxu0 0.0
    %1093 = vmatprep.subr.mxu0 0.0
    %1094 = vmatpush1.msra.mxu0 0.0
    %1095 = vmatprep.subr.mxu0 0.0
    %1096 = vmatpush1.msra.mxu0 0.0
    %1097 = vmatprep.subr.mxu0 0.0
    %1098 = vmatpush1.msra.mxu0 0.0
    %1099 = vmatprep.subr.mxu0 0.0
    %1100 = vmatpush1.msra.mxu0 0.0
    %1101 = vmatprep.subr.mxu0 0.0
    %1102 = vmatpush1.msra.mxu0 0.0
    %1103 = vmatprep.subr.mxu0 0.0
    %1104 = vmatpush1.msra.mxu0 0.0
    %1105 = vmatprep.subr.mxu0 0.0
    %1106 = vmatpush1.msra.mxu0 0.0
    %1107 = vmatprep.subr.mxu0 0.0
    %1108 = vmatpush1.msra.mxu0 0.0
    %1109 = vmatprep.subr.mxu0 0.0
    %1110 = vmatpush1.msra.mxu0 0.0
    %1111 = vmatprep.subr.mxu0 0.0
    %1112 = vmatpush1.msra.mxu0 0.0
    %1113 = vmatprep.mubr.f32.mxu0 0.0
    %1114 = vmatmul.mubr.f32.gmra.mrb[0].mxu0 %v1047
    %v1115 = vpop.f32.mrb[0].mxu0
    %v1116 = vadd.f32 %v1039, %v1115
    %v1117 = vpop.f32.mrb[0].mxu0
    %v1118 = vadd.f32 %v1043, %v1117
    %1119 = vdwg.mxu0
    %v1120 = vmax.f32 %v1116, 0.0
    %v1121 = vmax.f32 %v1118, 0.0
    %v1122 = vld [vmem:[#allocation16] sm:$0xff]
    %v1123 = vld [vmem:[#allocation16 + $0x8] sm:$0xff]
    %v1124 = vld [vmem:[#allocation16 + $0x10] sm:$0xff]
    %v1125 = vld [vmem:[#allocation16 + $0x18] sm:$0xff]
    %v1126 = vld [vmem:[#allocation16 + $0x20] sm:$0xff]
    %v1127 = vld [vmem:[#allocation16 + $0x28] sm:$0xff]
    %v1128 = vld [vmem:[#allocation16 + $0x30] sm:$0xff]
    %v1129 = vld [vmem:[#allocation16 + $0x38] sm:$0xff]
    %v1130 = vld [vmem:[#allocation16 + $0x40] sm:$0xff]
    %v1131 = vld [vmem:[#allocation16 + $0x48] sm:$0xff]
    %v1132 = vld [vmem:[#allocation16 + $0x50] sm:$0xff]
    %v1133 = vld [vmem:[#allocation16 + $0x58] sm:$0xff]
    %v1134 = vld [vmem:[#allocation16 + $0x60] sm:$0xff]
    %v1135 = vld [vmem:[#allocation16 + $0x68] sm:$0xff]
    %v1136 = vld [vmem:[#allocation16 + $0x70] sm:$0xff]
    %v1137 = vld [vmem:[#allocation16 + $0x78] sm:$0xff]
    %v1138 = vld [vmem:[#allocation16 + $0x80] sm:$0xff]
    %v1139 = vld [vmem:[#allocation16 + $0x88] sm:$0xff]
    %v1140 = vld [vmem:[#allocation16 + $0x90] sm:$0xff]
    %v1141 = vld [vmem:[#allocation16 + $0x98] sm:$0xff]
    %v1142 = vld [vmem:[#allocation16 + $0xa0] sm:$0xff]
    %v1143 = vld [vmem:[#allocation16 + $0xa8] sm:$0xff]
    %v1144 = vld [vmem:[#allocation16 + $0xb0] sm:$0xff]
    %v1145 = vld [vmem:[#allocation16 + $0xb8] sm:$0xff]
    %v1146 = vld [vmem:[#allocation16 + $0xc0] sm:$0xff]
    %v1147 = vld [vmem:[#allocation16 + $0xc8] sm:$0xff]
    %v1148 = vld [vmem:[#allocation16 + $0xd0] sm:$0xff]
    %v1149 = vld [vmem:[#allocation16 + $0xd8] sm:$0xff]
    %v1150 = vld [vmem:[#allocation16 + $0xe0] sm:$0xff]
    %v1151 = vld [vmem:[#allocation16 + $0xe8] sm:$0xff]
    %v1152 = vld [vmem:[#allocation16 + $0xf0] sm:$0xff]
    %v1153 = vld [vmem:[#allocation16 + $0xf8] sm:$0xff]
    %v1154 = vld [vmem:[%s15] sm:$0x1]
    %v1156 = vlaneseq
    %v1157 = vshrl.u32 %v1156, 7
    %v1158 = vsub.s32 0, %v1157
    %v1159 = vrot.slane %v1154, %v1158
    %1161 = vmatprep.subr.mxu0 0.0
    %1162 = vmatpush1.msra.mxu0 %v1122
    %1163 = vmatprep.subr.mxu0 0.0
    %1164 = vmatpush1.msra.mxu0 %v1123
    %1165 = vmatprep.subr.mxu0 0.0
    %1166 = vmatpush1.msra.mxu0 %v1124
    %1167 = vmatprep.subr.mxu0 0.0
    %1168 = vmatpush1.msra.mxu0 %v1125
    %1169 = vmatprep.subr.mxu0 0.0
    %1170 = vmatpush1.msra.mxu0 %v1126
    %1171 = vmatprep.subr.mxu0 0.0
    %1172 = vmatpush1.msra.mxu0 %v1127
    %1173 = vmatprep.subr.mxu0 0.0
    %1174 = vmatpush1.msra.mxu0 %v1128
    %1175 = vmatprep.subr.mxu0 0.0
    %1176 = vmatpush1.msra.mxu0 %v1129
    %1177 = vmatprep.subr.mxu0 0.0
    %1178 = vmatpush1.msra.mxu0 %v1130
    %1179 = vmatprep.subr.mxu0 0.0
    %1180 = vmatpush1.msra.mxu0 %v1131
    %1181 = vmatprep.subr.mxu0 0.0
    %1182 = vmatpush1.msra.mxu0 %v1132
    %1183 = vmatprep.subr.mxu0 0.0
    %1184 = vmatpush1.msra.mxu0 %v1133
    %1185 = vmatprep.subr.mxu0 0.0
    %1186 = vmatpush1.msra.mxu0 %v1134
    %1187 = vmatprep.subr.mxu0 0.0
    %1188 = vmatpush1.msra.mxu0 %v1135
    %1189 = vmatprep.subr.mxu0 0.0
    %1190 = vmatpush1.msra.mxu0 %v1136
    %1191 = vmatprep.subr.mxu0 0.0
    %1192 = vmatpush1.msra.mxu0 %v1137
    %1193 = vmatprep.subr.mxu0 0.0
    %1194 = vmatpush1.msra.mxu0 %v1138
    %1195 = vmatprep.subr.mxu0 0.0
    %1196 = vmatpush1.msra.mxu0 %v1139
    %1197 = vmatprep.subr.mxu0 0.0
    %1198 = vmatpush1.msra.mxu0 %v1140
    %1199 = vmatprep.subr.mxu0 0.0
    %1200 = vmatpush1.msra.mxu0 %v1141
    %1201 = vmatprep.subr.mxu0 0.0
    %1202 = vmatpush1.msra.mxu0 %v1142
    %1203 = vmatprep.subr.mxu0 0.0
    %1204 = vmatpush1.msra.mxu0 %v1143
    %1205 = vmatprep.subr.mxu0 0.0
    %1206 = vmatpush1.msra.mxu0 %v1144
    %1207 = vmatprep.subr.mxu0 0.0
    %1208 = vmatpush1.msra.mxu0 %v1145
    %1209 = vmatprep.subr.mxu0 0.0
    %1210 = vmatpush1.msra.mxu0 %v1146
    %1211 = vmatprep.subr.mxu0 0.0
    %1212 = vmatpush1.msra.mxu0 %v1147
    %1213 = vmatprep.subr.mxu0 0.0
    %1214 = vmatpush1.msra.mxu0 %v1148
    %1215 = vmatprep.subr.mxu0 0.0
    %1216 = vmatpush1.msra.mxu0 %v1149
    %1217 = vmatprep.subr.mxu0 0.0
    %1218 = vmatpush1.msra.mxu0 %v1150
    %1219 = vmatprep.subr.mxu0 0.0
    %1220 = vmatpush1.msra.mxu0 %v1151
    %1221 = vmatprep.subr.mxu0 0.0
    %1222 = vmatpush1.msra.mxu0 %v1152
    %1223 = vmatprep.subr.mxu0 0.0
    %1224 = vmatpush1.msra.mxu0 %v1153
    %1225 = vmatprep.mubr.f32.mxu0 %v1121
    %1226 = vmatmul.mubr.f32.gmra.mrb[0].mxu0 %v1120
    %v1227 = vpop.f32.mrb[0].mxu0
    %v1228 = vadd.f32 %v1159, %v1227
    %v1229 = vpop.f32.mrb[0].mxu0
    %1230 = vdwg.mxu0
    %1231 = vst [vmem:[#allocation18] sm:$0x3] %v1228
    // Predicated region
    $region94: #{tpu_custom_call.1} parent=1 // pred_check
      _
    $region95: #{tpu_custom_call.1} parent=1 // pred_check_branch
      %1233 = sbr.rel (0) target = $region97
    $region96: #{tpu_custom_call.1} parent=1 // pred_region
      %s1235 = ssub.s32 32, 32
      %1236 = vsyncadd [#allocation6], %s1235
      %s1238 = sshll.u32 [#allocation18], 4
      %s1239 = int_to_ptr.vmem [resolvable:$true] %s1238
      %1241 = dma.vmem_to_hbm [thread:$0]  %s1239, 32, %s16, [#allocation6]
    $region97: #{tpu_custom_call.1} parent=1 // pred_fallthru
      _
    // Predicated region
    $region98: #{tpu_custom_call.1} parent=1 // pred_check
      _
    $region99: #{tpu_custom_call.1} parent=1 // pred_check_branch
      %1243 = sbr.rel (0) target = $region101
    $region100: #{tpu_custom_call.1} parent=1 // pred_region
      %s1245 = ssub.s32 32, 32
      %1246 = vsyncadd [#allocation20], %s1245
      %s1248 = sshll.u32 [#allocation19], 4
      %s1249 = int_to_ptr.vmem [resolvable:$true] %s1248
      %1251 = dma.vmem_to_hbm [thread:$0]  %s1249, 32, %s17, [#allocation20]
    $region101: #{tpu_custom_call.1} parent=1 // pred_fallthru
      _
    // Predicated region
    $region102: #{tpu_custom_call.1} parent=1 // pred_check
      _
    $region103: #{tpu_custom_call.1} parent=1 // pred_check_branch
      %1253 = sbr.rel (0) target = $region105
    $region104: #{tpu_custom_call.1} parent=1 // pred_region
      %1254 = dma.done [#allocation6], 32
    $region105: #{tpu_custom_call.1} parent=1 // pred_fallthru
      _
    // Predicated region
    $region106: #{tpu_custom_call.1} parent=1 // pred_check
      _
    $region107: #{tpu_custom_call.1} parent=1 // pred_check_branch
      %1256 = sbr.rel (0) target = $region109
    $region108: #{tpu_custom_call.1} parent=1 // pred_region
      %1257 = dma.done [#allocation20], 32
    $region109: #{tpu_custom_call.1} parent=1 // pred_fallthru
      _
    %1258 = vsyncpa [#allocation5], 1
    %1259 = vsyncpa [#allocation8], 1
    %1260 = vsyncpa [#allocation11], 1
    %1261 = vsyncpa [#allocation14], 1
    %1262 = vsyncpa [#allocation17], 1
    %1263 = vsyncpa [#allocation6], 1
    %1264 = vsyncpa [#allocation20], 1

</llo_original>
